<compile_context>
chip_gen: v7x
topology: tpu7x:2x2x1
jax: 0.10.0
libtpu: 0.0.40
codegen_flags: <defaults>
</compile_context>

<pallas_src>
import functools
import math

import jax
import jax.numpy as jnp
from jax import lax
from jax.experimental import pallas as pl
from jax.experimental.pallas import tpu as pltpu

EPS = 1e-5        # nn.LayerNorm default
_NEG_INF = -1e30  # finite "minus infinity" for masking (exp underflows to 0)


# ----------------------------------------------------------------------------
# Helpers
# ----------------------------------------------------------------------------
@functools.lru_cache(maxsize=1)
def _vmem_limit_bytes():
    try:
        cap = getattr(pltpu.get_tpu_info(), "vmem_capacity_bytes", 0)
        if cap:
            return int(cap * 0.8)   # generation-aware: ~51 MiB v7x, ~102 MiB v5e/v6e
    except Exception:
        pass
    return 64 * 1024 * 1024


def _pick_tile(n, candidates):
    for c in candidates:
        if n % c == 0:
            return c
    return n


def _const_spec(a):
    nd = a.ndim
    return pl.BlockSpec(a.shape, lambda *_, nd=nd: (0,) * nd)


def _layernorm(x, g, b):
    mu = jnp.mean(x, axis=-1, keepdims=True)
    var = jnp.mean((x - mu) ** 2, axis=-1, keepdims=True)
    return (x - mu) * lax.rsqrt(var + EPS) * g + b


# ----------------------------------------------------------------------------
# Kernel A: norm1 + linear_reduce + fused QKV projection + RoPE (per (b, s-tile))
# ----------------------------------------------------------------------------
def _project_kernel(src_ref, cond_ref, ra_ref, rb_ref,
                    g1_ref, b1_ref, wrs_ref, wrc_ref, br_ref,
                    wqkv_ref, bqkv_ref,
                    red_ref, q_ref, k_ref, v_ref):
    f32, bf16 = jnp.float32, jnp.bfloat16
    src = src_ref[0]                       # (ts, E) f32
    cond = cond_ref[0]                     # (ts, C) f32
    E = src.shape[-1]
    half = E // 2

    # norm1 + split linear_reduce: cat([ns, cond]) @ Wr == ns@Wr_s + cond@Wr_c
    ns = _layernorm(src, g1_ref[0], b1_ref[0])
    reduced = (jnp.dot(ns.astype(bf16), wrs_ref[...], preferred_element_type=f32)
               + jnp.dot(cond.astype(bf16), wrc_ref[...], preferred_element_type=f32)
               + br_ref[0])                # (ts, E) f32

    # fused QKV: one lane-dense (ts,E)@(E,3E) matmul; Wq/bq pre-scaled by 1/sqrt(hd).
    qkv = (jnp.dot(reduced.astype(bf16), wqkv_ref[...], preferred_element_type=f32)
           + bqkv_ref[0])                  # (ts, 3E) f32
    q = qkv[:, :E]
    k = qkv[:, E:2 * E]
    v = qkv[:, 2 * E:3 * E]

    # RoPE (full-width): out[c] = x[c]*A[c] + x[(c + E/2) mod E]*B[c]
    def partner(x):
        if E % 256 == 0:
            return pltpu.roll(x, shift=half, axis=1)      # XLU lane rotate
        return jnp.concatenate([x[:, half:], x[:, :half]], axis=-1)

    ra = ra_ref[...]
    rb = rb_ref[...]
    q = q * ra + partner(q) * rb
    k = k * ra + partner(k) * rb

    red_ref[0] = reduced.astype(red_ref.dtype)
    q_ref[0] = q.astype(q_ref.dtype)
    k_ref[0] = k.astype(k_ref.dtype)
    v_ref[0] = v.astype(v_ref.dtype)


def _project(src, cond, lp, rope_a, rope_b):
    B, S, E = src.shape
    C = cond.shape[-1]
    ts = _pick_tile(S, (256, 128, 64, 32, 16, 8))
    grid = (B, S // ts)

    weights = [lp["g1"], lp["b1"], lp["wrs"], lp["wrc"], lp["br"],
               lp["wqkv"], lp["bqkv"]]
    in_specs = [
        pl.BlockSpec((1, ts, E), lambda b, si: (b, si, 0)),
        pl.BlockSpec((1, ts, C), lambda b, si: (b, si, 0)),
        pl.BlockSpec((ts, E), lambda b, si: (si, 0)),     # rope A
        pl.BlockSpec((ts, E), lambda b, si: (si, 0)),     # rope B
    ] + [_const_spec(w) for w in weights]

    out_shape = (jax.ShapeDtypeStruct((B, S, E), jnp.float32),   # reduced
                 jax.ShapeDtypeStruct((B, S, E), jnp.bfloat16),  # q (rotated, scaled)
                 jax.ShapeDtypeStruct((B, S, E), jnp.bfloat16),  # k (rotated)
                 jax.ShapeDtypeStruct((B, S, E), jnp.bfloat16))  # v
    out_specs = tuple(pl.BlockSpec((1, ts, E), lambda b, si: (b, si, 0))
                      for _ in range(4))

    return pl.pallas_call(
        _project_kernel,
        out_shape=out_shape,
        grid=grid,
        in_specs=in_specs,
        out_specs=out_specs,
        compiler_params=pltpu.CompilerParams(
            dimension_semantics=("parallel", "parallel"),
            vmem_limit_bytes=_vmem_limit_bytes()),
    )(src, cond, rope_a, rope_b, *weights)


# ----------------------------------------------------------------------------
# Kernel B: flash attention with online softmax (per (b*h, q-tile, kv-tile))
# ----------------------------------------------------------------------------
def _flash_kernel(causal, has_mask, *refs):
    f32, bf16 = jnp.float32, jnp.bfloat16
    if has_mask:
        q_ref, k_ref, v_ref, mask_ref, o_ref, m_sc, l_sc, acc_sc = refs
    else:
        q_ref, k_ref, v_ref, o_ref, m_sc, l_sc, acc_sc = refs
        mask_ref = None

    qi = pl.program_id(1)
    ki = pl.program_id(2)
    tq = q_ref.shape[1]
    tkv = k_ref.shape[1]

    @pl.when(ki == 0)
    def _():
        m_sc[...] = jnp.full(m_sc.shape, _NEG_INF, f32)
        l_sc[...] = jnp.zeros(l_sc.shape, f32)
        acc_sc[...] = jnp.zeros(acc_sc.shape, f32)

    q = q_ref[0]                                           # (tq, hd) bf16 (pre-scaled)
    k = k_ref[0]                                           # (tkv, hd) bf16
    s = lax.dot_general(q, k, (((1,), (1,)), ((), ())),
                        preferred_element_type=f32)        # (tq, tkv) f32
    if has_mask:
        s = s + mask_ref[...]
    if causal:
        row = qi * tq + lax.broadcasted_iota(jnp.int32, (tq, tkv), 0)
        col = ki * tkv + lax.broadcasted_iota(jnp.int32, (tq, tkv), 1)
        s = jnp.where(col > row, _NEG_INF, s)

    m_prev = m_sc[...]
    m_new = jnp.maximum(m_prev, jnp.max(s, axis=-1, keepdims=True))
    alpha = jnp.exp(m_prev - m_new)
    p = jnp.exp(s - m_new)
    l_sc[...] = alpha * l_sc[...] + jnp.sum(p, axis=-1, keepdims=True)
    acc_sc[...] = alpha * acc_sc[...] + jnp.dot(p.astype(bf16), v_ref[0],
                                                preferred_element_type=f32)
    m_sc[...] = m_new

    @pl.when(ki == pl.num_programs(2) - 1)
    def _():
        o_ref[0] = (acc_sc[...] *
                    pl.reciprocal(l_sc[...], approx=True)).astype(o_ref.dtype)


def _flash_attention(q, k, v, mask=None, causal=False):
    BH, S, hd = q.shape
    tq = _pick_tile(S, (256, 128, 64, 32, 16, 8))
    if mask is not None:
        tkv = _pick_tile(S, (512, 256, 128))     # keep mask tiles lane-dense
    else:
        tkv = _pick_tile(S, (512, 256, 128, 64, 32, 16, 8))

    inputs = [q, k, v]
    in_specs = [pl.BlockSpec((1, tq, hd), lambda b, qi, ki: (b, qi, 0)),
                pl.BlockSpec((1, tkv, hd), lambda b, qi, ki: (b, ki, 0)),
                pl.BlockSpec((1, tkv, hd), lambda b, qi, ki: (b, ki, 0))]
    if mask is not None:
        inputs.append(mask)
        in_specs.append(pl.BlockSpec((tq, tkv), lambda b, qi, ki: (qi, ki)))

    kernel = functools.partial(_flash_kernel, causal, mask is not None)
    return pl.pallas_call(
        kernel,
        out_shape=jax.ShapeDtypeStruct((BH, S, hd), jnp.bfloat16),
        grid=(BH, S // tq, S // tkv),
        in_specs=in_specs,
        out_specs=pl.BlockSpec((1, tq, hd), lambda b, qi, ki: (b, qi, 0)),
        scratch_shapes=[pltpu.VMEM((tq, 1), jnp.float32),
                        pltpu.VMEM((tq, 1), jnp.float32),
                        pltpu.VMEM((tq, hd), jnp.float32)],
        compiler_params=pltpu.CompilerParams(
            dimension_semantics=("parallel", "parallel", "arbitrary"),
            vmem_limit_bytes=_vmem_limit_bytes()),
    )(*inputs)


# ----------------------------------------------------------------------------
# Kernel C: output projection + residual + norm2 + FFN + residual
# ----------------------------------------------------------------------------
def _post_kernel(ctx_ref, red_ref, wo_ref, bo_ref, g2_ref, b2_ref,
                 w1_ref, bf1_ref, w2_ref, bf2_ref, out_ref):
    f32, bf16 = jnp.float32, jnp.bfloat16
    ctx = ctx_ref[0]                                       # (ts, E) bf16
    attn = jnp.dot(ctx, wo_ref[...], preferred_element_type=f32) + bo_ref[0]
    x = attn + red_ref[0]
    nx = _layernorm(x, g2_ref[0], b2_ref[0])
    h1 = jnp.maximum(
        jnp.dot(nx.astype(bf16), w1_ref[...], preferred_element_type=f32)
        + bf1_ref[0], 0.0).astype(bf16)
    ff = jnp.dot(h1, w2_ref[...], preferred_element_type=f32) + bf2_ref[0]
    out_ref[0] = (ff + x).astype(out_ref.dtype)


def _post_attention(ctx, reduced, lp):
    B, S, E = reduced.shape
    ts = _pick_tile(S, (256, 128, 64, 32, 16, 8))
    grid = (B, S // ts)
    weights = [lp["wo"], lp["bo"], lp["g2"], lp["b2"],
               lp["w1"], lp["bf1"], lp["w2"], lp["bf2"]]
    in_specs = [pl.BlockSpec((1, ts, E), lambda b, si: (b, si, 0)),
                pl.BlockSpec((1, ts, E), lambda b, si: (b, si, 0))]
    in_specs += [_const_spec(w) for w in weights]
    return pl.pallas_call(
        _post_kernel,
        out_shape=jax.ShapeDtypeStruct((B, S, E), jnp.float32),
        grid=grid,
        in_specs=in_specs,
        out_specs=pl.BlockSpec((1, ts, E), lambda b, si: (b, si, 0)),
        compiler_params=pltpu.CompilerParams(
            dimension_semantics=("parallel", "parallel"),
            vmem_limit_bytes=_vmem_limit_bytes()),
    )(ctx, reduced, *weights)


# ----------------------------------------------------------------------------
# Final vocab projection: weight-stationary 2-D tiled matmul over M = B*S
# ----------------------------------------------------------------------------
def _final_kernel(x_ref, w_ref, b_ref, out_ref):
    out_ref[...] = (jnp.dot(x_ref[...].astype(jnp.bfloat16), w_ref[...],
                            preferred_element_type=jnp.float32)
                    + b_ref[...]).astype(out_ref.dtype)


def final_projection(x, w, b):
    B, S, E = x.shape
    N = w.shape[-1]
    M = B * S
    xm = x.reshape(M, E)
    tn = _pick_tile(N, (1024, 512, 256, 128))
    tm = _pick_tile(M, (512, 256, 128, 64, 32, 16, 8))
    out = pl.pallas_call(
        _final_kernel,
        out_shape=jax.ShapeDtypeStruct((M, N), x.dtype),
        grid=(N // tn, M // tm),                 # N outer -> each weight tile read once
        in_specs=[pl.BlockSpec((tm, E), lambda n, m: (m, 0)),
                  pl.BlockSpec((E, tn), lambda n, m: (0, n)),
                  pl.BlockSpec((1, tn), lambda n, m: (0, n))],
        out_specs=pl.BlockSpec((tm, tn), lambda n, m: (m, n)),
        compiler_params=pltpu.CompilerParams(
            dimension_semantics=("parallel", "parallel"),
            vmem_limit_bytes=_vmem_limit_bytes()),
    )(xm, w.astype(jnp.bfloat16), b)
    return out


# ----------------------------------------------------------------------------
# Layer / model wrappers
# ----------------------------------------------------------------------------
def _prep_layer(p, scale):
    """Split / stack / cast layer params outside the kernels (plain JAX, cheap)."""
    bf16 = jnp.bfloat16
    E = p["wq"].shape[0]
    wr = p["wr"]                                        # (E + C, E)
    wqkv = jnp.concatenate([p["wq"] * scale, p["wk"], p["wv"]], axis=1)
    bqkv = jnp.concatenate([p["bq"] * scale, p["bk"], p["bv"]], axis=1)
    return dict(
        g1=p["g1"], b1=p["b1"],
        wrs=wr[:E].astype(bf16), wrc=wr[E:].astype(bf16), br=p["br"],
        wqkv=wqkv.astype(bf16), bqkv=bqkv.astype(jnp.float32),
        wo=p["wo"].astype(bf16), bo=p["bo"],
        g2=p["g2"], b2=p["b2"],
        w1=p["w1"].astype(bf16), bf1=p["bf1"],
        w2=p["w2"].astype(bf16), bf2=p["bf2"])


def transformer_block(src, cond, lp, rope_a, rope_b, num_heads,
                      mask=None, causal=False):
    B, S, E = src.shape
    H = num_heads
    hd = E // H

    reduced, q, k, v = _project(src, cond, lp, rope_a, rope_b)

    def split_heads(t):                                  # (B,S,E) -> (B*H,S,hd)
        return jnp.transpose(t.reshape(B, S, H, hd), (0, 2, 1, 3)).reshape(B * H, S, hd)

    ctx = _flash_attention(split_heads(q), split_heads(k), split_heads(v),
                           mask=mask, causal=causal)     # (B*H, S, hd) bf16
    ctx = jnp.transpose(ctx.reshape(B, H, S, hd), (0, 2, 1, 3)).reshape(B, S, E)
    return _post_attention(ctx, reduced, lp)


def rope_cond_dac_transformer(src_tokens, cond, mask, params, cfg, causal=False):
    """src_tokens: (B, S, num_codebooks) int32; cond: (B, S, cond_size).

    `mask`: optional (S, S) additive float attention mask.  If `causal=True`
    the causal mask is generated inside the attention kernel and `mask` is
    ignored.
    """
    nc, V = cfg["num_codebooks"], cfg["vocab_size"]
    E, H = cfg["embed_size"], cfg["num_heads"]
    B, S = src_tokens.shape[0], src_tokens.shape[1]
    hd = E // H
    assert hd * H == E, "embed_size must be divisible by num_heads"

    # MultiEmbedding: per-codebook gather + concat (plain-JAX glue).
    emb_tables = params["emb"]                               # (nc, V, E // nc)
    src = jnp.concatenate(
        [emb_tables[i][src_tokens[:, :, i]] for i in range(nc)], axis=-1)
    src = src.astype(jnp.float32)
    cond = cond.astype(jnp.float32)

    # RoPE coefficient tables (matches RotaryPositionalEmbedding exactly):
    #   out[:, :E/2] = x1*sin - x2*cos ; out[:, E/2:] = x1*cos + x2*sin
    # => out[c] = x[c]*A[c] + x[(c+E/2) mod E]*B[c]
    #    with A = [sin | sin], B = [-cos | cos] (sin/cos repeat_interleave'd).
    dim_half = E // 2
    inv_freq = 1.0 / (10000.0 ** (jnp.arange(0.0, dim_half, 2.0) / dim_half))
    t = jnp.arange(S, dtype=jnp.float32)[:, None]
    freqs = t * inv_freq[None, :]                            # (S, E//4)
    sin_i = jnp.repeat(jnp.sin(freqs), 2, axis=1)            # (S, E//2)
    cos_i = jnp.repeat(jnp.cos(freqs), 2, axis=1)            # (S, E//2)
    rope_a = jnp.concatenate([sin_i, sin_i], axis=-1)        # (S, E)
    rope_b = jnp.concatenate([-cos_i, cos_i], axis=-1)       # (S, E)

    mask_arr = None
    if (mask is not None) and (not causal):
        mask_arr = mask.astype(jnp.float32)

    scale = 1.0 / math.sqrt(hd)                              # folded into Wq/bq
    x = src
    for layer_params in params["layers"]:
        lp = _prep_layer(layer_params, scale)
        x = transformer_block(x, cond, lp, rope_a, rope_b, H,
                              mask=mask_arr, causal=causal)

    logits = final_projection(x, params["wf"], params["bf"])
    return logits.reshape(B, S, nc, V)


# ----------------------------------------------------------------------------
# Deterministic parameter init
# ----------------------------------------------------------------------------
def init_params(key, cfg):
    E, C, FE = cfg["embed_size"], cfg["cond_size"], cfg["forward_expansion"]
    nc, V, L = cfg["num_codebooks"], cfg["vocab_size"], cfg["num_layers"]
    input_size = E + C

    def nrm(k, shape, scale=0.02):
        return scale * jax.random.normal(k, shape, dtype=jnp.float32)

    keys = iter(jax.random.split(key, 16 * L + 8))

    params = {"emb": nrm(next(keys), (nc, V, E // nc)), "layers": []}
    for _ in range(L):
        lp = {
            "g1": jnp.ones((1, E), jnp.float32), "b1": jnp.zeros((1, E), jnp.float32),
            "wr": nrm(next(keys), (input_size, E)), "br": nrm(next(keys), (1, E)),
            "wq": nrm(next(keys), (E, E)), "bq": nrm(next(keys), (1, E)),
            "wk": nrm(next(keys), (E, E)), "bk": nrm(next(keys), (1, E)),
            "wv": nrm(next(keys), (E, E)), "bv": nrm(next(keys), (1, E)),
            "wo": nrm(next(keys), (E, E)), "bo": nrm(next(keys), (1, E)),
            "g2": jnp.ones((1, E), jnp.float32), "b2": jnp.zeros((1, E), jnp.float32),
            "w1": nrm(next(keys), (E, FE * E)), "bf1": nrm(next(keys), (1, FE * E)),
            "w2": nrm(next(keys), (FE * E, E)), "bf2": nrm(next(keys), (1, E)),
        }
        params["layers"].append(lp)
    params["wf"] = nrm(next(keys), (E, nc * V))
    params["bf"] = nrm(next(keys), (1, nc * V))
    return params


# ----------------------------------------------------------------------------
if __name__ == "__main__":
    cfg = dict(embed_size=32, num_layers=2, num_heads=2, forward_expansion=2,
               dropout=0.0, max_len=16, num_classes=16, num_codebooks=4,
               vocab_size=16, cond_size=8)
    B, S = 2, 8

    key = jax.random.PRNGKey(0)
    k_par, k_src, k_cond = jax.random.split(key, 3)

    params = init_params(k_par, cfg)
    src_tokens = jax.random.randint(k_src, (B, S, cfg["num_codebooks"]), 0,
                                    cfg["vocab_size"], dtype=jnp.int32)
    cond = jax.random.normal(k_cond, (B, S, cfg["cond_size"]), dtype=jnp.float32)

    # Causal attention mask is generated inside the flash kernel (causal=True).
    logits = rope_cond_dac_transformer(src_tokens, cond, None, params, cfg,
                                       causal=True)
    logits = jax.block_until_ready(logits)

    assert logits.shape == (B, S, cfg["num_codebooks"], cfg["vocab_size"])
    assert bool(jnp.all(jnp.isfinite(logits)))
    print("KERNEL_OK")
</pallas_src>

<mosaic_0001>
module attributes {stable_mosaic.version = 11 : i64} {
  func.func @_project_kernel(%arg0: i32, %arg1: i32, %arg2: memref<1x8x32xf32, #tpu.memory_space<vmem>>, %arg3: memref<1x8x8xf32, #tpu.memory_space<vmem>>, %arg4: memref<8x32xf32, #tpu.memory_space<vmem>>, %arg5: memref<8x32xf32, #tpu.memory_space<vmem>>, %arg6: memref<1x32xf32, #tpu.memory_space<vmem>>, %arg7: memref<1x32xf32, #tpu.memory_space<vmem>>, %arg8: memref<32x32xbf16, #tpu.memory_space<vmem>>, %arg9: memref<8x32xbf16, #tpu.memory_space<vmem>>, %arg10: memref<1x32xf32, #tpu.memory_space<vmem>>, %arg11: memref<32x96xbf16, #tpu.memory_space<vmem>>, %arg12: memref<1x96xf32, #tpu.memory_space<vmem>>, %arg13: memref<1x8x32xf32, #tpu.memory_space<vmem>>, %arg14: memref<1x8x32xbf16, #tpu.memory_space<vmem>>, %arg15: memref<1x8x32xbf16, #tpu.memory_space<vmem>>, %arg16: memref<1x8x32xbf16, #tpu.memory_space<vmem>>) attributes {dimension_semantics = [#tpu.dimension_semantics<parallel>, #tpu.dimension_semantics<parallel>], iteration_bounds = array<i64: 2, 1>, scalar_prefetch = 0 : i64, scratch_operands = 0 : i64, tpu.core_type = #tpu.core_type<tc>, window_params = [{transform_indices = @transform_0, window_bounds = array<i64: 1, 8, 32>}, {transform_indices = @transform_1, window_bounds = array<i64: 1, 8, 8>}, {transform_indices = @transform_2, window_bounds = array<i64: 8, 32>}, {transform_indices = @transform_3, window_bounds = array<i64: 8, 32>}, {pipeline_mode = #tpu.pipeline_mode<synchronous>, transform_indices = @transform_4, window_bounds = array<i64: 1, 32>}, {pipeline_mode = #tpu.pipeline_mode<synchronous>, transform_indices = @transform_5, window_bounds = array<i64: 1, 32>}, {pipeline_mode = #tpu.pipeline_mode<synchronous>, transform_indices = @transform_6, window_bounds = array<i64: 32, 32>}, {pipeline_mode = #tpu.pipeline_mode<synchronous>, transform_indices = @transform_7, window_bounds = array<i64: 8, 32>}, {pipeline_mode = #tpu.pipeline_mode<synchronous>, transform_indices = @transform_8, window_bounds = array<i64: 1, 32>}, {pipeline_mode = #tpu.pipeline_mode<synchronous>, transform_indices = @transform_9, window_bounds = array<i64: 32, 96>}, {pipeline_mode = #tpu.pipeline_mode<synchronous>, transform_indices = @transform_10, window_bounds = array<i64: 1, 96>}, {transform_indices = @transform_11, window_bounds = array<i64: 1, 8, 32>}, {transform_indices = @transform_12, window_bounds = array<i64: 1, 8, 32>}, {transform_indices = @transform_13, window_bounds = array<i64: 1, 8, 32>}, {transform_indices = @transform_14, window_bounds = array<i64: 1, 8, 32>}]} {
    %c0 = arith.constant 0 : index
    %c0_0 = arith.constant 0 : index
    %c0_1 = arith.constant 0 : index
    %0 = vector.load %arg2[%c0, %c0_0, %c0_1] : memref<1x8x32xf32, #tpu.memory_space<vmem>>, vector<1x8x32xf32>
    %1 = vector.shape_cast %0 : vector<1x8x32xf32> to vector<8x32xf32>
    %c0_2 = arith.constant 0 : index
    %c0_3 = arith.constant 0 : index
    %c0_4 = arith.constant 0 : index
    %2 = vector.load %arg3[%c0_2, %c0_3, %c0_4] : memref<1x8x8xf32, #tpu.memory_space<vmem>>, vector<1x8x8xf32>
    %3 = vector.shape_cast %2 : vector<1x8x8xf32> to vector<8x8xf32>
    %c0_5 = arith.constant 0 : index
    %c0_6 = arith.constant 0 : index
    %4 = vector.load %arg6[%c0_5, %c0_6] : memref<1x32xf32, #tpu.memory_space<vmem>>, vector<1x32xf32>
    %5 = vector.shape_cast %4 : vector<1x32xf32> to vector<32xf32>
    %c0_7 = arith.constant 0 : index
    %c0_8 = arith.constant 0 : index
    %6 = vector.load %arg7[%c0_7, %c0_8] : memref<1x32xf32, #tpu.memory_space<vmem>>, vector<1x32xf32>
    %7 = vector.shape_cast %6 : vector<1x32xf32> to vector<32xf32>
    %cst = arith.constant dense<0.000000e+00> : vector<8xf32>
    %8 = vector.multi_reduction <add>, %1, %cst [1] : vector<8x32xf32> to vector<8xf32>
    %9 = vector.shape_cast %8 : vector<8xf32> to vector<8x1xf32>
    %cst_9 = arith.constant 3.200000e+01 : f32
    %10 = vector.broadcast %cst_9 : f32 to vector<8x1xf32>
    %11 = arith.divf %9, %10 : vector<8x1xf32>
    %12 = vector.broadcast %11 : vector<8x1xf32> to vector<8x32xf32>
    %13 = arith.subf %1, %12 : vector<8x32xf32>
    %14 = arith.mulf %13, %13 : vector<8x32xf32>
    %cst_10 = arith.constant dense<0.000000e+00> : vector<8xf32>
    %15 = vector.multi_reduction <add>, %14, %cst_10 [1] : vector<8x32xf32> to vector<8xf32>
    %16 = vector.shape_cast %15 : vector<8xf32> to vector<8x1xf32>
    %cst_11 = arith.constant 3.200000e+01 : f32
    %17 = vector.broadcast %cst_11 : f32 to vector<8x1xf32>
    %18 = arith.divf %16, %17 : vector<8x1xf32>
    %19 = vector.broadcast %11 : vector<8x1xf32> to vector<8x32xf32>
    %20 = arith.subf %1, %19 : vector<8x32xf32>
    %cst_12 = arith.constant 9.99999974E-6 : f32
    %21 = vector.broadcast %cst_12 : f32 to vector<8x1xf32>
    %22 = arith.addf %18, %21 : vector<8x1xf32>
    %23 = math.rsqrt %22 : vector<8x1xf32>
    %24 = vector.broadcast %23 : vector<8x1xf32> to vector<8x32xf32>
    %25 = arith.mulf %20, %24 : vector<8x32xf32>
    %26 = vector.shape_cast %5 : vector<32xf32> to vector<1x32xf32>
    %27 = vector.broadcast %26 : vector<1x32xf32> to vector<8x32xf32>
    %28 = arith.mulf %25, %27 : vector<8x32xf32>
    %29 = vector.shape_cast %7 : vector<32xf32> to vector<1x32xf32>
    %30 = vector.broadcast %29 : vector<1x32xf32> to vector<8x32xf32>
    %31 = arith.addf %28, %30 : vector<8x32xf32>
    %32 = arith.truncf %31 : vector<8x32xf32> to vector<8x32xbf16>
    %c0_13 = arith.constant 0 : index
    %c0_14 = arith.constant 0 : index
    %33 = vector.load %arg8[%c0_13, %c0_14] : memref<32x32xbf16, #tpu.memory_space<vmem>>, vector<32x32xbf16>
    %cst_15 = arith.constant dense<0.000000e+00> : vector<8x32xf32>
    %34 = tpu.matmul %32, %33, %cst_15 {dimension_numbers = #tpu.dot_dimension_numbers<[1], [0], [0], [1], [0, 0, 1, 1], [], []>} : vector<8x32xbf16>, vector<32x32xbf16>, vector<8x32xf32> -> vector<8x32xf32>
    %35 = arith.truncf %3 : vector<8x8xf32> to vector<8x8xbf16>
    %c0_16 = arith.constant 0 : index
    %c0_17 = arith.constant 0 : index
    %36 = vector.load %arg9[%c0_16, %c0_17] : memref<8x32xbf16, #tpu.memory_space<vmem>>, vector<8x32xbf16>
    %cst_18 = arith.constant dense<0.000000e+00> : vector<8x32xf32>
    %37 = tpu.matmul %35, %36, %cst_18 {dimension_numbers = #tpu.dot_dimension_numbers<[1], [0], [0], [1], [0, 0, 1, 1], [], []>} : vector<8x8xbf16>, vector<8x32xbf16>, vector<8x32xf32> -> vector<8x32xf32>
    %38 = arith.addf %34, %37 : vector<8x32xf32>
    %c0_19 = arith.constant 0 : index
    %c0_20 = arith.constant 0 : index
    %39 = vector.load %arg10[%c0_19, %c0_20] : memref<1x32xf32, #tpu.memory_space<vmem>>, vector<1x32xf32>
    %40 = vector.shape_cast %39 : vector<1x32xf32> to vector<32xf32>
    %41 = vector.shape_cast %40 : vector<32xf32> to vector<1x32xf32>
    %42 = vector.broadcast %41 : vector<1x32xf32> to vector<8x32xf32>
    %43 = arith.addf %38, %42 : vector<8x32xf32>
    %44 = arith.truncf %43 : vector<8x32xf32> to vector<8x32xbf16>
    %c0_21 = arith.constant 0 : index
    %c0_22 = arith.constant 0 : index
    %45 = vector.load %arg11[%c0_21, %c0_22] : memref<32x96xbf16, #tpu.memory_space<vmem>>, vector<32x96xbf16>
    %cst_23 = arith.constant dense<0.000000e+00> : vector<8x96xf32>
    %46 = tpu.matmul %44, %45, %cst_23 {dimension_numbers = #tpu.dot_dimension_numbers<[1], [0], [0], [1], [0, 0, 1, 1], [], []>} : vector<8x32xbf16>, vector<32x96xbf16>, vector<8x96xf32> -> vector<8x96xf32>
    %c0_24 = arith.constant 0 : index
    %c0_25 = arith.constant 0 : index
    %47 = vector.load %arg12[%c0_24, %c0_25] : memref<1x96xf32, #tpu.memory_space<vmem>>, vector<1x96xf32>
    %48 = vector.shape_cast %47 : vector<1x96xf32> to vector<96xf32>
    %49 = vector.shape_cast %48 : vector<96xf32> to vector<1x96xf32>
    %50 = vector.broadcast %49 : vector<1x96xf32> to vector<8x96xf32>
    %51 = arith.addf %46, %50 : vector<8x96xf32>
    %52 = vector.extract_strided_slice %51 {offsets = [0, 0], sizes = [8, 32], strides = [1, 1]} : vector<8x96xf32> to vector<8x32xf32>
    %53 = vector.extract_strided_slice %51 {offsets = [0, 32], sizes = [8, 32], strides = [1, 1]} : vector<8x96xf32> to vector<8x32xf32>
    %54 = vector.extract_strided_slice %51 {offsets = [0, 64], sizes = [8, 32], strides = [1, 1]} : vector<8x96xf32> to vector<8x32xf32>
    %c0_26 = arith.constant 0 : index
    %c0_27 = arith.constant 0 : index
    %55 = vector.load %arg4[%c0_26, %c0_27] : memref<8x32xf32, #tpu.memory_space<vmem>>, vector<8x32xf32>
    %c0_28 = arith.constant 0 : index
    %c0_29 = arith.constant 0 : index
    %56 = vector.load %arg5[%c0_28, %c0_29] : memref<8x32xf32, #tpu.memory_space<vmem>>, vector<8x32xf32>
    %57 = arith.mulf %52, %55 : vector<8x32xf32>
    %58 = vector.extract_strided_slice %52 {offsets = [0, 16], sizes = [8, 16], strides = [1, 1]} : vector<8x32xf32> to vector<8x16xf32>
    %59 = vector.extract_strided_slice %52 {offsets = [0, 0], sizes = [8, 16], strides = [1, 1]} : vector<8x32xf32> to vector<8x16xf32>
    %60 = tpu.concatenate %58, %59 in 1 : vector<8x16xf32>, vector<8x16xf32> -> vector<8x32xf32>
    %61 = arith.mulf %60, %56 : vector<8x32xf32>
    %62 = arith.addf %57, %61 : vector<8x32xf32>
    %63 = arith.mulf %53, %55 : vector<8x32xf32>
    %64 = vector.extract_strided_slice %53 {offsets = [0, 16], sizes = [8, 16], strides = [1, 1]} : vector<8x32xf32> to vector<8x16xf32>
    %65 = vector.extract_strided_slice %53 {offsets = [0, 0], sizes = [8, 16], strides = [1, 1]} : vector<8x32xf32> to vector<8x16xf32>
    %66 = tpu.concatenate %64, %65 in 1 : vector<8x16xf32>, vector<8x16xf32> -> vector<8x32xf32>
    %67 = arith.mulf %66, %56 : vector<8x32xf32>
    %68 = arith.addf %63, %67 : vector<8x32xf32>
    %c0_30 = arith.constant 0 : index
    %c0_31 = arith.constant 0 : index
    %c0_32 = arith.constant 0 : index
    %69 = vector.load %arg13[%c0_30, %c0_31, %c0_32] : memref<1x8x32xf32, #tpu.memory_space<vmem>>, vector<1x8x32xf32>
    %70 = vector.shape_cast %69 : vector<1x8x32xf32> to vector<8x32xf32>
    %71 = vector.shape_cast %43 : vector<8x32xf32> to vector<1x8x32xf32>
    tpu.vector_store %arg13[%c0_30, %c0_31, %c0_32], %71 {strides = array<i32>} : memref<1x8x32xf32, #tpu.memory_space<vmem>>, vector<1x8x32xf32>,
    %72 = arith.truncf %62 : vector<8x32xf32> to vector<8x32xbf16>
    %c0_33 = arith.constant 0 : index
    %c0_34 = arith.constant 0 : index
    %c0_35 = arith.constant 0 : index
    %73 = vector.load %arg14[%c0_33, %c0_34, %c0_35] : memref<1x8x32xbf16, #tpu.memory_space<vmem>>, vector<1x8x32xbf16>
    %74 = vector.shape_cast %73 : vector<1x8x32xbf16> to vector<8x32xbf16>
    %75 = vector.shape_cast %72 : vector<8x32xbf16> to vector<1x8x32xbf16>
    tpu.vector_store %arg14[%c0_33, %c0_34, %c0_35], %75 {strides = array<i32>} : memref<1x8x32xbf16, #tpu.memory_space<vmem>>, vector<1x8x32xbf16>,
    %76 = arith.truncf %68 : vector<8x32xf32> to vector<8x32xbf16>
    %c0_36 = arith.constant 0 : index
    %c0_37 = arith.constant 0 : index
    %c0_38 = arith.constant 0 : index
    %77 = vector.load %arg15[%c0_36, %c0_37, %c0_38] : memref<1x8x32xbf16, #tpu.memory_space<vmem>>, vector<1x8x32xbf16>
    %78 = vector.shape_cast %77 : vector<1x8x32xbf16> to vector<8x32xbf16>
    %79 = vector.shape_cast %76 : vector<8x32xbf16> to vector<1x8x32xbf16>
    tpu.vector_store %arg15[%c0_36, %c0_37, %c0_38], %79 {strides = array<i32>} : memref<1x8x32xbf16, #tpu.memory_space<vmem>>, vector<1x8x32xbf16>,
    %80 = arith.truncf %54 : vector<8x32xf32> to vector<8x32xbf16>
    %c0_39 = arith.constant 0 : index
    %c0_40 = arith.constant 0 : index
    %c0_41 = arith.constant 0 : index
    %81 = vector.load %arg16[%c0_39, %c0_40, %c0_41] : memref<1x8x32xbf16, #tpu.memory_space<vmem>>, vector<1x8x32xbf16>
    %82 = vector.shape_cast %81 : vector<1x8x32xbf16> to vector<8x32xbf16>
    %83 = vector.shape_cast %80 : vector<8x32xbf16> to vector<1x8x32xbf16>
    tpu.vector_store %arg16[%c0_39, %c0_40, %c0_41], %83 {strides = array<i32>} : memref<1x8x32xbf16, #tpu.memory_space<vmem>>, vector<1x8x32xbf16>,
    return
  }
  func.func @transform_0(%arg0: i32, %arg1: i32) -> (i32, i32, i32) {
    %c0_i32 = arith.constant 0 : i32
    %c0_i32_0 = arith.constant 0 : i32
    return %arg0, %arg1, %c0_i32 : i32, i32, i32
  }
  func.func @transform_1(%arg0: i32, %arg1: i32) -> (i32, i32, i32) {
    %c0_i32 = arith.constant 0 : i32
    %c0_i32_0 = arith.constant 0 : i32
    return %arg0, %arg1, %c0_i32 : i32, i32, i32
  }
  func.func @transform_2(%arg0: i32, %arg1: i32) -> (i32, i32) {
    %c0_i32 = arith.constant 0 : i32
    %c0_i32_0 = arith.constant 0 : i32
    return %arg1, %c0_i32 : i32, i32
  }
  func.func @transform_3(%arg0: i32, %arg1: i32) -> (i32, i32) {
    %c0_i32 = arith.constant 0 : i32
    %c0_i32_0 = arith.constant 0 : i32
    return %arg1, %c0_i32 : i32, i32
  }
  func.func @transform_4(%arg0: i32, %arg1: i32) -> (i32, i32) {
    %c0_i32 = arith.constant 0 : i32
    %c0_i32_0 = arith.constant 0 : i32
    %c0_i32_1 = arith.constant 0 : i32
    return %c0_i32, %c0_i32_0 : i32, i32
  }
  func.func @transform_5(%arg0: i32, %arg1: i32) -> (i32, i32) {
    %c0_i32 = arith.constant 0 : i32
    %c0_i32_0 = arith.constant 0 : i32
    %c0_i32_1 = arith.constant 0 : i32
    return %c0_i32, %c0_i32_0 : i32, i32
  }
  func.func @transform_6(%arg0: i32, %arg1: i32) -> (i32, i32) {
    %c0_i32 = arith.constant 0 : i32
    %c0_i32_0 = arith.constant 0 : i32
    %c0_i32_1 = arith.constant 0 : i32
    return %c0_i32, %c0_i32_0 : i32, i32
  }
  func.func @transform_7(%arg0: i32, %arg1: i32) -> (i32, i32) {
    %c0_i32 = arith.constant 0 : i32
    %c0_i32_0 = arith.constant 0 : i32
    %c0_i32_1 = arith.constant 0 : i32
    return %c0_i32, %c0_i32_0 : i32, i32
  }
  func.func @transform_8(%arg0: i32, %arg1: i32) -> (i32, i32) {
    %c0_i32 = arith.constant 0 : i32
    %c0_i32_0 = arith.constant 0 : i32
    %c0_i32_1 = arith.constant 0 : i32
    return %c0_i32, %c0_i32_0 : i32, i32
  }
  func.func @transform_9(%arg0: i32, %arg1: i32) -> (i32, i32) {
    %c0_i32 = arith.constant 0 : i32
    %c0_i32_0 = arith.constant 0 : i32
    %c0_i32_1 = arith.constant 0 : i32
    return %c0_i32, %c0_i32_0 : i32, i32
  }
  func.func @transform_10(%arg0: i32, %arg1: i32) -> (i32, i32) {
    %c0_i32 = arith.constant 0 : i32
    %c0_i32_0 = arith.constant 0 : i32
    %c0_i32_1 = arith.constant 0 : i32
    return %c0_i32, %c0_i32_0 : i32, i32
  }
  func.func @transform_11(%arg0: i32, %arg1: i32) -> (i32, i32, i32) {
    %c0_i32 = arith.constant 0 : i32
    %c0_i32_0 = arith.constant 0 : i32
    return %arg0, %arg1, %c0_i32 : i32, i32, i32
  }
  func.func @transform_12(%arg0: i32, %arg1: i32) -> (i32, i32, i32) {
    %c0_i32 = arith.constant 0 : i32
    %c0_i32_0 = arith.constant 0 : i32
    return %arg0, %arg1, %c0_i32 : i32, i32, i32
  }
  func.func @transform_13(%arg0: i32, %arg1: i32) -> (i32, i32, i32) {
    %c0_i32 = arith.constant 0 : i32
    %c0_i32_0 = arith.constant 0 : i32
    return %arg0, %arg1, %c0_i32 : i32, i32, i32
  }
  func.func @transform_14(%arg0: i32, %arg1: i32) -> (i32, i32, i32) {
    %c0_i32 = arith.constant 0 : i32
    %c0_i32_0 = arith.constant 0 : i32
    return %arg0, %arg1, %c0_i32 : i32, i32, i32
  }
}

</mosaic_0001>

<llo_original>
// kernel: tpu_custom_call.1
$region0: #{tpu_custom_call.1}
  #allocation0 [shape = 'u32[]', space=smem, size = 0x4, offset = 0x4, fixed_abs, tag = 'smem constant byte address 0x4 - core index']
  #allocation1 [shape = 'u32[144,128]{1,0:T(1,128)}', space=vmem, size = 0x12000, scoped, tag = 'internal scratch']
  %s0 = inlined_call_operand.hbm [shape: f32[2,8,32], index: 0, kind: input, shape index: {}]
  %s1 = inlined_call_operand.hbm [shape: f32[2,8,8], index: 1, kind: input, shape index: {}]
  %s2 = inlined_call_operand.hbm [shape: f32[8,32], index: 2, kind: input, shape index: {}]
  %s3 = inlined_call_operand.hbm [shape: f32[8,32], index: 3, kind: input, shape index: {}]
  %s4 = inlined_call_operand.hbm [shape: f32[1,32], index: 4, kind: input, shape index: {}]
  %s5 = inlined_call_operand.hbm [shape: f32[1,32], index: 5, kind: input, shape index: {}]
  %s6 = inlined_call_operand.hbm [shape: bf16[32,32], index: 6, kind: input, shape index: {}]
  %s7 = inlined_call_operand.hbm [shape: bf16[8,32], index: 7, kind: input, shape index: {}]
  %s8 = inlined_call_operand.hbm [shape: f32[1,32], index: 8, kind: input, shape index: {}]
  %s9 = inlined_call_operand.hbm [shape: bf16[32,96], index: 9, kind: input, shape index: {}]
  %s10 = inlined_call_operand.hbm [shape: f32[1,96], index: 10, kind: input, shape index: {}]
  %s11 = inlined_call_operand.hbm [shape: f32[2,8,32], index: 11, kind: output, shape index: {0}]
  %s12 = inlined_call_operand.hbm [shape: bf16[2,8,32], index: 12, kind: output, shape index: {1}]
  %s13 = inlined_call_operand.hbm [shape: bf16[2,8,32], index: 13, kind: output, shape index: {2}]
  %s14 = inlined_call_operand.hbm [shape: bf16[2,8,32], index: 14, kind: output, shape index: {3}]
  %15 = xla_tuple %s11, %s12, %s13, %s14
  %s16 = sld [smem:[#allocation0]]
  $region145: #{tpu_custom_call.1} parent=0
    _
  %s18 = ssub.s32 1, %s16
  %s19 = scalar_select 0, %s18, %s16
  $region1: #{tpu_custom_call.1} parent=0
    #allocation2 [shape = 'u8[8192]{0}', space=vmem, size = 0x2000, scoped, tag = 'input window, operand 0']
    #allocation3 [shape = 's32[2]{0}', space=sflag, size = 0x8, scoped, tag = 'scoped memory for tpu_custom_call.1']
    #allocation4 [shape = 's32[2]{0}', space=sflag, size = 0x8, scoped, tag = 'scoped memory for tpu_custom_call.1']
    #allocation5 [shape = 'u8[8192]{0}', space=vmem, size = 0x2000, scoped, tag = 'input window, operand 1']
    #allocation6 [shape = 's32[2]{0}', space=sflag, size = 0x8, scoped, tag = 'scoped memory for tpu_custom_call.1']
    #allocation7 [shape = 'u8[4096]{0}', space=vmem, size = 0x1000, scoped, tag = 'input window, operand 2, single buffered']
    #allocation8 [shape = 'u8[4096]{0}', space=vmem, size = 0x1000, scoped, tag = 'input window, operand 3, single buffered']
    #allocation9 [shape = 's32[1]{0}', space=sflag, size = 0x4, scoped, tag = 'scoped memory for tpu_custom_call.1']
    #allocation10 [shape = 'u8[512]{0}', space=vmem, size = 0x400, scoped, tag = 'input window, operand 4, single buffered']
    #allocation11 [shape = 'u8[512]{0}', space=vmem, size = 0x400, scoped, tag = 'input window, operand 5, single buffered']
    #allocation12 [shape = 's32[1]{0}', space=sflag, size = 0x4, scoped, tag = 'scoped memory for tpu_custom_call.1']
    #allocation13 [shape = 'u8[8192]{0}', space=vmem, size = 0x2000, scoped, tag = 'input window, operand 6, single buffered']
    #allocation14 [shape = 'u8[2048]{0}', space=vmem, size = 0x800, scoped, tag = 'input window, operand 7, single buffered']
    #allocation15 [shape = 's32[1]{0}', space=sflag, size = 0x4, scoped, tag = 'scoped memory for tpu_custom_call.1']
    #allocation16 [shape = 'u8[512]{0}', space=vmem, size = 0x400, scoped, tag = 'input window, operand 8, single buffered']
    #allocation17 [shape = 'u8[8192]{0}', space=vmem, size = 0x2000, scoped, tag = 'input window, operand 9, single buffered']
    #allocation18 [shape = 's32[1]{0}', space=sflag, size = 0x4, scoped, tag = 'scoped memory for tpu_custom_call.1']
    #allocation19 [shape = 'u8[512]{0}', space=vmem, size = 0x400, scoped, tag = 'input window, operand 10, single buffered']
    #allocation20 [shape = 'u8[8192]{0}', space=vmem, size = 0x2000, scoped, tag = 'output window, operand 0']
    #allocation21 [shape = 'u8[4096]{0}', space=vmem, size = 0x1000, scoped, tag = 'output window, operand 1']
    #allocation22 [shape = 's32[2]{0}', space=sflag, size = 0x8, scoped, tag = 'scoped memory for tpu_custom_call.1']
    #allocation23 [shape = 'u8[4096]{0}', space=vmem, size = 0x1000, scoped, tag = 'output window, operand 2']
    #allocation24 [shape = 'u8[4096]{0}', space=vmem, size = 0x1000, scoped, tag = 'output window, operand 3']
    #allocation25 [shape = 's32[2]{0}', space=sflag, size = 0x8, scoped, tag = 'scoped memory for tpu_custom_call.1']
    %20 = vsyncpa [#allocation3], 0
    %s21 = scalar_lea.sflag [#allocation3], 1
    %22 = vsyncpa %s21, 0
    %23 = vsyncpa [#allocation6], 0
    %s24 = scalar_lea.sflag [#allocation6], 1
    %25 = vsyncpa %s24, 0
    %26 = vsyncpa [#allocation9], 0
    %27 = vsyncpa [#allocation12], 0
    %28 = vsyncpa [#allocation15], 0
    %29 = vsyncpa [#allocation18], 0
    %30 = vsyncpa [#allocation4], 0
    %s31 = scalar_lea.sflag [#allocation4], 1
    %32 = vsyncpa %s31, 0
    %33 = vsyncpa [#allocation22], 0
    %s34 = scalar_lea.sflag [#allocation22], 1
    %35 = vsyncpa %s34, 0
    %36 = vsyncpa [#allocation25], 0
    %s37 = scalar_lea.sflag [#allocation25], 1
    %38 = vsyncpa %s37, 0
    loop: start=0, step=1, limit=4
    $region2: #{tpu_custom_call.1} parent=1 // loop_pre_header
      _
    $region3: #{tpu_custom_call.1} parent=1 // loop_header
      %s40 = sphi 0, %s44
      %p41 = scmp.ge.s32.totalorder %s40, 4
      %s47 = sphi 0, %s59
      %s48 = sphi 0, %s55
      %s49 = sphi 0, %s47
      %s50 = sphi 0, %s48
      %s51 = sphi 0, %s49
      %s52 = sphi 0, %s50
      %s64 = sphi 0, %s66
      %s67 = sphi 0, %s64
      %s68 = sphi 0, %s67
      %s84 = sphi 0, %s68
      %s92 = sphi 0, %s94
      %s95 = sphi 0, %s92
      %s96 = sphi 0, %s95
      %s112 = sphi 0, %s96
      %s118 = sphi 0, %s120
      %s121 = sphi 0, %s118
      %s122 = sphi 0, %s121
      %s138 = sphi 0, %s122
      %s144 = sphi 0, %s146
      %s147 = sphi 0, %s144
      %s148 = sphi 0, %s147
      %s164 = sphi 0, %s148
      %s168 = sphi 0, %s168
      %s170 = sphi 0, %s168
      %s171 = sphi 0, %s170
      %s185 = sphi 0, %s171
      %s189 = sphi 0, %s189
      %s191 = sphi 0, %s189
      %s192 = sphi 0, %s191
      %s206 = sphi 0, %s192
      %s210 = sphi 0, %s210
      %s212 = sphi 0, %s210
      %s213 = sphi 0, %s212
      %s227 = sphi 0, %s213
      %s231 = sphi 0, %s231
      %s233 = sphi 0, %s231
      %s234 = sphi 0, %s233
      %s248 = sphi 0, %s234
      %s252 = sphi 0, %s252
      %s254 = sphi 0, %s252
      %s255 = sphi 0, %s254
      %s269 = sphi 0, %s255
      %s273 = sphi 0, %s273
      %s275 = sphi 0, %s273
      %s276 = sphi 0, %s275
      %s290 = sphi 0, %s276
      %s294 = sphi 0, %s294
      %s296 = sphi 0, %s294
      %s297 = sphi 0, %s296
      %s311 = sphi 0, %s297
      %s319 = sphi 0, %s321
      %s322 = sphi 0, %s319
      %s323 = sphi 0, %s322
      %s339 = sphi 0, %s323
      %s347 = sphi 0, %s349
      %s350 = sphi 0, %s347
      %s351 = sphi 0, %s350
      %s367 = sphi 0, %s351
      %s375 = sphi 0, %s377
      %s378 = sphi 0, %s375
      %s379 = sphi 0, %s378
      %s395 = sphi 0, %s379
      %s403 = sphi 0, %s405
      %s406 = sphi 0, %s403
      %s407 = sphi 0, %s406
      %s423 = sphi 0, %s407
    $region4: #{tpu_custom_call.1} parent=1 // loop_header_branch
      %43 = sbr.rel (%p41) target = $region8
    $region5: #{tpu_custom_call.1} parent=1 // loop_body
      %s45 = ssub.s32 %s40, 1
      %s46 = ssub.s32 %s40, 2
      %s53 = sadd.s32 1, %s48
      %p54 = scmp.ge.s32.totalorder %s53, 1
      %s55 = scalar_select %p54, 0, %s53
      %s56 = sadd.s32 1, %s47
      %s57 = scalar_select %p54, %s56, %s47
      %p58 = scmp.ge.s32.totalorder %s57, 2
      %s59 = scalar_select %p58, 0, %s57
      %s60 = ssub.s32 %s47, %s59
      %s61 = ssub.s32 %s48, %s55
      %s62 = sor.u32 %s60, %s61
      %p63 = scmp.eq.s32.totalorder %s62, 0
      %s65 = sadd.s32 %s64, 1
      %s66 = scalar_select %p63, %s64, %s65
      %p69 = pneg %p63
      %p70 = scmp.eq.s32.totalorder %s40, 1
      %p71 = por %p69, %p70
      %p72 = scmp.ne.s32.totalorder %s64, %s67
      %p73 = scmp.eq.s32.totalorder %s40, 0
      %p74 = por %p72, %p73
      %p75 = scmp.ne.s32.totalorder %s64, %s67
      %p76 = scmp.eq.s32.totalorder %s45, 1
      %p77 = por %p75, %p76
      %p78 = scmp.ne.s32.totalorder %s67, %s68
      %p79 = scmp.eq.s32.totalorder %s45, 0
      %p80 = por %p78, %p79
      %p81 = scmp.ne.s32.totalorder %s67, %s68
      %p82 = scmp.eq.s32.totalorder %s46, 1
      %p83 = por %p81, %p82
      %p85 = scmp.ne.s32.totalorder %s68, %s84
      %p86 = scmp.eq.s32.totalorder %s46, 0
      %p87 = por %p85, %p86
      %s88 = ssub.s32 %s47, %s59
      %s89 = ssub.s32 %s48, %s55
      %s90 = sor.u32 %s88, %s89
      %p91 = scmp.eq.s32.totalorder %s90, 0
      %s93 = sadd.s32 %s92, 1
      %s94 = scalar_select %p91, %s92, %s93
      %p97 = pneg %p91
      %p98 = scmp.eq.s32.totalorder %s40, 1
      %p99 = por %p97, %p98
      %p100 = scmp.ne.s32.totalorder %s92, %s95
      %p101 = scmp.eq.s32.totalorder %s40, 0
      %p102 = por %p100, %p101
      %p103 = scmp.ne.s32.totalorder %s92, %s95
      %p104 = scmp.eq.s32.totalorder %s45, 1
      %p105 = por %p103, %p104
      %p106 = scmp.ne.s32.totalorder %s95, %s96
      %p107 = scmp.eq.s32.totalorder %s45, 0
      %p108 = por %p106, %p107
      %p109 = scmp.ne.s32.totalorder %s95, %s96
      %p110 = scmp.eq.s32.totalorder %s46, 1
      %p111 = por %p109, %p110
      %p113 = scmp.ne.s32.totalorder %s96, %s112
      %p114 = scmp.eq.s32.totalorder %s46, 0
      %p115 = por %p113, %p114
      %s116 = ssub.s32 %s48, %s55
      %p117 = scmp.eq.s32.totalorder %s116, 0
      %s119 = sadd.s32 %s118, 1
      %s120 = scalar_select %p117, %s118, %s119
      %p123 = pneg %p117
      %p124 = scmp.eq.s32.totalorder %s40, 1
      %p125 = por %p123, %p124
      %p126 = scmp.ne.s32.totalorder %s118, %s121
      %p127 = scmp.eq.s32.totalorder %s40, 0
      %p128 = por %p126, %p127
      %p129 = scmp.ne.s32.totalorder %s118, %s121
      %p130 = scmp.eq.s32.totalorder %s45, 1
      %p131 = por %p129, %p130
      %p132 = scmp.ne.s32.totalorder %s121, %s122
      %p133 = scmp.eq.s32.totalorder %s45, 0
      %p134 = por %p132, %p133
      %p135 = scmp.ne.s32.totalorder %s121, %s122
      %p136 = scmp.eq.s32.totalorder %s46, 1
      %p137 = por %p135, %p136
      %p139 = scmp.ne.s32.totalorder %s122, %s138
      %p140 = scmp.eq.s32.totalorder %s46, 0
      %p141 = por %p139, %p140
      %s142 = ssub.s32 %s48, %s55
      %p143 = scmp.eq.s32.totalorder %s142, 0
      %s145 = sadd.s32 %s144, 1
      %s146 = scalar_select %p143, %s144, %s145
      %p149 = pneg %p143
      %p150 = scmp.eq.s32.totalorder %s40, 1
      %p151 = por %p149, %p150
      %p152 = scmp.ne.s32.totalorder %s144, %s147
      %p153 = scmp.eq.s32.totalorder %s40, 0
      %p154 = por %p152, %p153
      %p155 = scmp.ne.s32.totalorder %s144, %s147
      %p156 = scmp.eq.s32.totalorder %s45, 1
      %p157 = por %p155, %p156
      %p158 = scmp.ne.s32.totalorder %s147, %s148
      %p159 = scmp.eq.s32.totalorder %s45, 0
      %p160 = por %p158, %p159
      %p161 = scmp.ne.s32.totalorder %s147, %s148
      %p162 = scmp.eq.s32.totalorder %s46, 1
      %p163 = por %p161, %p162
      %p165 = scmp.ne.s32.totalorder %s148, %s164
      %p166 = scmp.eq.s32.totalorder %s46, 0
      %p167 = por %p165, %p166
      %s169 = sadd.s32 %s168, 1
      %p172 = scmp.eq.s32.totalorder %s40, 1
      %p173 = scmp.ne.s32.totalorder %s168, %s170
      %p174 = scmp.eq.s32.totalorder %s40, 0
      %p175 = por %p173, %p174
      %p176 = scmp.ne.s32.totalorder %s168, %s170
      %p177 = scmp.eq.s32.totalorder %s45, 1
      %p178 = por %p176, %p177
      %p179 = scmp.ne.s32.totalorder %s170, %s171
      %p180 = scmp.eq.s32.totalorder %s45, 0
      %p181 = por %p179, %p180
      %p182 = scmp.ne.s32.totalorder %s170, %s171
      %p183 = scmp.eq.s32.totalorder %s46, 1
      %p184 = por %p182, %p183
      %p186 = scmp.ne.s32.totalorder %s171, %s185
      %p187 = scmp.eq.s32.totalorder %s46, 0
      %p188 = por %p186, %p187
      %s190 = sadd.s32 %s189, 1
      %p193 = scmp.eq.s32.totalorder %s40, 1
      %p194 = scmp.ne.s32.totalorder %s189, %s191
      %p195 = scmp.eq.s32.totalorder %s40, 0
      %p196 = por %p194, %p195
      %p197 = scmp.ne.s32.totalorder %s189, %s191
      %p198 = scmp.eq.s32.totalorder %s45, 1
      %p199 = por %p197, %p198
      %p200 = scmp.ne.s32.totalorder %s191, %s192
      %p201 = scmp.eq.s32.totalorder %s45, 0
      %p202 = por %p200, %p201
      %p203 = scmp.ne.s32.totalorder %s191, %s192
      %p204 = scmp.eq.s32.totalorder %s46, 1
      %p205 = por %p203, %p204
      %p207 = scmp.ne.s32.totalorder %s192, %s206
      %p208 = scmp.eq.s32.totalorder %s46, 0
      %p209 = por %p207, %p208
      %s211 = sadd.s32 %s210, 1
      %p214 = scmp.eq.s32.totalorder %s40, 1
      %p215 = scmp.ne.s32.totalorder %s210, %s212
      %p216 = scmp.eq.s32.totalorder %s40, 0
      %p217 = por %p215, %p216
      %p218 = scmp.ne.s32.totalorder %s210, %s212
      %p219 = scmp.eq.s32.totalorder %s45, 1
      %p220 = por %p218, %p219
      %p221 = scmp.ne.s32.totalorder %s212, %s213
      %p222 = scmp.eq.s32.totalorder %s45, 0
      %p223 = por %p221, %p222
      %p224 = scmp.ne.s32.totalorder %s212, %s213
      %p225 = scmp.eq.s32.totalorder %s46, 1
      %p226 = por %p224, %p225
      %p228 = scmp.ne.s32.totalorder %s213, %s227
      %p229 = scmp.eq.s32.totalorder %s46, 0
      %p230 = por %p228, %p229
      %s232 = sadd.s32 %s231, 1
      %p235 = scmp.eq.s32.totalorder %s40, 1
      %p236 = scmp.ne.s32.totalorder %s231, %s233
      %p237 = scmp.eq.s32.totalorder %s40, 0
      %p238 = por %p236, %p237
      %p239 = scmp.ne.s32.totalorder %s231, %s233
      %p240 = scmp.eq.s32.totalorder %s45, 1
      %p241 = por %p239, %p240
      %p242 = scmp.ne.s32.totalorder %s233, %s234
      %p243 = scmp.eq.s32.totalorder %s45, 0
      %p244 = por %p242, %p243
      %p245 = scmp.ne.s32.totalorder %s233, %s234
      %p246 = scmp.eq.s32.totalorder %s46, 1
      %p247 = por %p245, %p246
      %p249 = scmp.ne.s32.totalorder %s234, %s248
      %p250 = scmp.eq.s32.totalorder %s46, 0
      %p251 = por %p249, %p250
      %s253 = sadd.s32 %s252, 1
      %p256 = scmp.eq.s32.totalorder %s40, 1
      %p257 = scmp.ne.s32.totalorder %s252, %s254
      %p258 = scmp.eq.s32.totalorder %s40, 0
      %p259 = por %p257, %p258
      %p260 = scmp.ne.s32.totalorder %s252, %s254
      %p261 = scmp.eq.s32.totalorder %s45, 1
      %p262 = por %p260, %p261
      %p263 = scmp.ne.s32.totalorder %s254, %s255
      %p264 = scmp.eq.s32.totalorder %s45, 0
      %p265 = por %p263, %p264
      %p266 = scmp.ne.s32.totalorder %s254, %s255
      %p267 = scmp.eq.s32.totalorder %s46, 1
      %p268 = por %p266, %p267
      %p270 = scmp.ne.s32.totalorder %s255, %s269
      %p271 = scmp.eq.s32.totalorder %s46, 0
      %p272 = por %p270, %p271
      %s274 = sadd.s32 %s273, 1
      %p277 = scmp.eq.s32.totalorder %s40, 1
      %p278 = scmp.ne.s32.totalorder %s273, %s275
      %p279 = scmp.eq.s32.totalorder %s40, 0
      %p280 = por %p278, %p279
      %p281 = scmp.ne.s32.totalorder %s273, %s275
      %p282 = scmp.eq.s32.totalorder %s45, 1
      %p283 = por %p281, %p282
      %p284 = scmp.ne.s32.totalorder %s275, %s276
      %p285 = scmp.eq.s32.totalorder %s45, 0
      %p286 = por %p284, %p285
      %p287 = scmp.ne.s32.totalorder %s275, %s276
      %p288 = scmp.eq.s32.totalorder %s46, 1
      %p289 = por %p287, %p288
      %p291 = scmp.ne.s32.totalorder %s276, %s290
      %p292 = scmp.eq.s32.totalorder %s46, 0
      %p293 = por %p291, %p292
      %s295 = sadd.s32 %s294, 1
      %p298 = scmp.eq.s32.totalorder %s40, 1
      %p299 = scmp.ne.s32.totalorder %s294, %s296
      %p300 = scmp.eq.s32.totalorder %s40, 0
      %p301 = por %p299, %p300
      %p302 = scmp.ne.s32.totalorder %s294, %s296
      %p303 = scmp.eq.s32.totalorder %s45, 1
      %p304 = por %p302, %p303
      %p305 = scmp.ne.s32.totalorder %s296, %s297
      %p306 = scmp.eq.s32.totalorder %s45, 0
      %p307 = por %p305, %p306
      %p308 = scmp.ne.s32.totalorder %s296, %s297
      %p309 = scmp.eq.s32.totalorder %s46, 1
      %p310 = por %p308, %p309
      %p312 = scmp.ne.s32.totalorder %s297, %s311
      %p313 = scmp.eq.s32.totalorder %s46, 0
      %p314 = por %p312, %p313
      %s315 = ssub.s32 %s47, %s59
      %s316 = ssub.s32 %s48, %s55
      %s317 = sor.u32 %s315, %s316
      %p318 = scmp.eq.s32.totalorder %s317, 0
      %s320 = sadd.s32 %s319, 1
      %s321 = scalar_select %p318, %s319, %s320
      %p324 = pneg %p318
      %p325 = scmp.eq.s32.totalorder %s40, 1
      %p326 = por %p324, %p325
      %p327 = scmp.ne.s32.totalorder %s319, %s322
      %p328 = scmp.eq.s32.totalorder %s40, 0
      %p329 = por %p327, %p328
      %p330 = scmp.ne.s32.totalorder %s319, %s322
      %p331 = scmp.eq.s32.totalorder %s45, 1
      %p332 = por %p330, %p331
      %p333 = scmp.ne.s32.totalorder %s322, %s323
      %p334 = scmp.eq.s32.totalorder %s45, 0
      %p335 = por %p333, %p334
      %p336 = scmp.ne.s32.totalorder %s322, %s323
      %p337 = scmp.eq.s32.totalorder %s46, 1
      %p338 = por %p336, %p337
      %p340 = scmp.ne.s32.totalorder %s323, %s339
      %p341 = scmp.eq.s32.totalorder %s46, 0
      %p342 = por %p340, %p341
      %s343 = ssub.s32 %s47, %s59
      %s344 = ssub.s32 %s48, %s55
      %s345 = sor.u32 %s343, %s344
      %p346 = scmp.eq.s32.totalorder %s345, 0
      %s348 = sadd.s32 %s347, 1
      %s349 = scalar_select %p346, %s347, %s348
      %p352 = pneg %p346
      %p353 = scmp.eq.s32.totalorder %s40, 1
      %p354 = por %p352, %p353
      %p355 = scmp.ne.s32.totalorder %s347, %s350
      %p356 = scmp.eq.s32.totalorder %s40, 0
      %p357 = por %p355, %p356
      %p358 = scmp.ne.s32.totalorder %s347, %s350
      %p359 = scmp.eq.s32.totalorder %s45, 1
      %p360 = por %p358, %p359
      %p361 = scmp.ne.s32.totalorder %s350, %s351
      %p362 = scmp.eq.s32.totalorder %s45, 0
      %p363 = por %p361, %p362
      %p364 = scmp.ne.s32.totalorder %s350, %s351
      %p365 = scmp.eq.s32.totalorder %s46, 1
      %p366 = por %p364, %p365
      %p368 = scmp.ne.s32.totalorder %s351, %s367
      %p369 = scmp.eq.s32.totalorder %s46, 0
      %p370 = por %p368, %p369
      %s371 = ssub.s32 %s47, %s59
      %s372 = ssub.s32 %s48, %s55
      %s373 = sor.u32 %s371, %s372
      %p374 = scmp.eq.s32.totalorder %s373, 0
      %s376 = sadd.s32 %s375, 1
      %s377 = scalar_select %p374, %s375, %s376
      %p380 = pneg %p374
      %p381 = scmp.eq.s32.totalorder %s40, 1
      %p382 = por %p380, %p381
      %p383 = scmp.ne.s32.totalorder %s375, %s378
      %p384 = scmp.eq.s32.totalorder %s40, 0
      %p385 = por %p383, %p384
      %p386 = scmp.ne.s32.totalorder %s375, %s378
      %p387 = scmp.eq.s32.totalorder %s45, 1
      %p388 = por %p386, %p387
      %p389 = scmp.ne.s32.totalorder %s378, %s379
      %p390 = scmp.eq.s32.totalorder %s45, 0
      %p391 = por %p389, %p390
      %p392 = scmp.ne.s32.totalorder %s378, %s379
      %p393 = scmp.eq.s32.totalorder %s46, 1
      %p394 = por %p392, %p393
      %p396 = scmp.ne.s32.totalorder %s379, %s395
      %p397 = scmp.eq.s32.totalorder %s46, 0
      %p398 = por %p396, %p397
      %s399 = ssub.s32 %s47, %s59
      %s400 = ssub.s32 %s48, %s55
      %s401 = sor.u32 %s399, %s400
      %p402 = scmp.eq.s32.totalorder %s401, 0
      %s404 = sadd.s32 %s403, 1
      %s405 = scalar_select %p402, %s403, %s404
      %p408 = pneg %p402
      %p409 = scmp.eq.s32.totalorder %s40, 1
      %p410 = por %p408, %p409
      %p411 = scmp.ne.s32.totalorder %s403, %s406
      %p412 = scmp.eq.s32.totalorder %s40, 0
      %p413 = por %p411, %p412
      %p414 = scmp.ne.s32.totalorder %s403, %s406
      %p415 = scmp.eq.s32.totalorder %s45, 1
      %p416 = por %p414, %p415
      %p417 = scmp.ne.s32.totalorder %s406, %s407
      %p418 = scmp.eq.s32.totalorder %s45, 0
      %p419 = por %p417, %p418
      %p420 = scmp.ne.s32.totalorder %s406, %s407
      %p421 = scmp.eq.s32.totalorder %s46, 1
      %p422 = por %p420, %p421
      %p424 = scmp.ne.s32.totalorder %s407, %s423
      %p425 = scmp.eq.s32.totalorder %s46, 0
      %p426 = por %p424, %p425
      %p427 = scmp.le.s32.totalorder 1, %s40
      %p428 = scmp.lt.s32.totalorder %s40, 3
      %p429 = pnand %p427, %p428
      %p430 = pneg %p429
      // Predicated region
      $region9: #{tpu_custom_call.1} parent=5 // pred_check
        _
      $region10: #{tpu_custom_call.1} parent=5 // pred_check_branch
        %432 = sbr.rel (%p429) target = $region12
      $region11: #{tpu_custom_call.1} parent=5 // pred_region
        %s433 = ssub.s32 %s40, 1
        // Predicated region
        $region13: #{tpu_custom_call.1} parent=11 // pred_check
          %p434 = pneg %p134
        $region14: #{tpu_custom_call.1} parent=11 // pred_check_branch
          %436 = sbr.rel (%p434) target = $region16
        $region15: #{tpu_custom_call.1} parent=11 // pred_region
          %s438 = ssub.s32 128, 128
          %439 = vsyncadd [#allocation6], %s438
          %s440 = smul.addr %s50, 128
          %s441 = scalar_lea.hbm %s2, %s440
          %s443 = sshll.u32 [#allocation7], 4
          %s444 = int_to_ptr.vmem [resolvable:$true] %s443
          %446 = dma.hbm_to_vmem [thread:$0]  %s441, 128, %s444, [#allocation6]
        $region16: #{tpu_custom_call.1} parent=11 // pred_fallthru
          _
        // Predicated region
        $region17: #{tpu_custom_call.1} parent=11 // pred_check
          %p447 = pneg %p160
        $region18: #{tpu_custom_call.1} parent=11 // pred_check_branch
          %449 = sbr.rel (%p447) target = $region20
        $region19: #{tpu_custom_call.1} parent=11 // pred_region
          %s451 = ssub.s32 128, 128
          %452 = vsyncadd [#allocation9], %s451
          %s453 = smul.addr %s50, 128
          %s454 = scalar_lea.hbm %s3, %s453
          %s456 = sshll.u32 [#allocation8], 4
          %s457 = int_to_ptr.vmem [resolvable:$true] %s456
          %459 = dma.hbm_to_vmem [thread:$0]  %s454, 128, %s457, [#allocation9]
        $region20: #{tpu_custom_call.1} parent=11 // pred_fallthru
          _
        // Predicated region
        $region21: #{tpu_custom_call.1} parent=11 // pred_check
          %p460 = pneg %p181
        $region22: #{tpu_custom_call.1} parent=11 // pred_check_branch
          %462 = sbr.rel (%p460) target = $region24
        $region23: #{tpu_custom_call.1} parent=11 // pred_region
          %s464 = ssub.s32 16, 16
          %465 = vsyncadd [#allocation9], %s464
          %s467 = sshll.u32 [#allocation10], 4
          %s468 = int_to_ptr.vmem [resolvable:$true] %s467
          %470 = dma.hbm_to_vmem [thread:$0]  %s4, 16, %s468, [#allocation9]
        $region24: #{tpu_custom_call.1} parent=11 // pred_fallthru
          _
        // Predicated region
        $region25: #{tpu_custom_call.1} parent=11 // pred_check
          %p471 = pneg %p202
        $region26: #{tpu_custom_call.1} parent=11 // pred_check_branch
          %473 = sbr.rel (%p471) target = $region28
        $region27: #{tpu_custom_call.1} parent=11 // pred_region
          %s475 = ssub.s32 16, 16
          %476 = vsyncadd [#allocation12], %s475
          %s478 = sshll.u32 [#allocation11], 4
          %s479 = int_to_ptr.vmem [resolvable:$true] %s478
          %481 = dma.hbm_to_vmem [thread:$0]  %s5, 16, %s479, [#allocation12]
        $region28: #{tpu_custom_call.1} parent=11 // pred_fallthru
          _
        // Predicated region
        $region29: #{tpu_custom_call.1} parent=11 // pred_check
          %p482 = pneg %p223
        $region30: #{tpu_custom_call.1} parent=11 // pred_check_branch
          %484 = sbr.rel (%p482) target = $region32
        $region31: #{tpu_custom_call.1} parent=11 // pred_region
          %s486 = ssub.s32 256, 256
          %487 = vsyncadd [#allocation12], %s486
          %s488 = sshll.u32 [#allocation13], 4
          %s489 = int_to_ptr.vmem [resolvable:$true] %s488
          %494 = dma.hbm_to_vmem [thread:$0]  %s6, 256, %s489, [#allocation12], 64, 64, 4
        $region32: #{tpu_custom_call.1} parent=11 // pred_fallthru
          _
        // Predicated region
        $region33: #{tpu_custom_call.1} parent=11 // pred_check
          %p495 = pneg %p244
        $region34: #{tpu_custom_call.1} parent=11 // pred_check_branch
          %497 = sbr.rel (%p495) target = $region36
        $region35: #{tpu_custom_call.1} parent=11 // pred_region
          %s499 = ssub.s32 64, 64
          %500 = vsyncadd [#allocation15], %s499
          %s502 = sshll.u32 [#allocation14], 4
          %s503 = int_to_ptr.vmem [resolvable:$true] %s502
          %505 = dma.hbm_to_vmem [thread:$0]  %s7, 64, %s503, [#allocation15]
        $region36: #{tpu_custom_call.1} parent=11 // pred_fallthru
          _
        // Predicated region
        $region37: #{tpu_custom_call.1} parent=11 // pred_check
          %p506 = pneg %p265
        $region38: #{tpu_custom_call.1} parent=11 // pred_check_branch
          %508 = sbr.rel (%p506) target = $region40
        $region39: #{tpu_custom_call.1} parent=11 // pred_region
          %s510 = ssub.s32 16, 16
          %511 = vsyncadd [#allocation15], %s510
          %s513 = sshll.u32 [#allocation16], 4
          %s514 = int_to_ptr.vmem [resolvable:$true] %s513
          %516 = dma.hbm_to_vmem [thread:$0]  %s8, 16, %s514, [#allocation15]
        $region40: #{tpu_custom_call.1} parent=11 // pred_fallthru
          _
        // Predicated region
        $region41: #{tpu_custom_call.1} parent=11 // pred_check
          %p517 = pneg %p286
        $region42: #{tpu_custom_call.1} parent=11 // pred_check_branch
          %519 = sbr.rel (%p517) target = $region44
        $region43: #{tpu_custom_call.1} parent=11 // pred_region
          %s521 = ssub.s32 256, 256
          %522 = vsyncadd [#allocation18], %s521
          %s523 = sshll.u32 [#allocation17], 4
          %s524 = int_to_ptr.vmem [resolvable:$true] %s523
          %529 = dma.hbm_to_vmem [thread:$0]  %s9, 256, %s524, [#allocation18], 64, 64, 4
        $region44: #{tpu_custom_call.1} parent=11 // pred_fallthru
          _
        // Predicated region
        $region45: #{tpu_custom_call.1} parent=11 // pred_check
          %p530 = pneg %p307
        $region46: #{tpu_custom_call.1} parent=11 // pred_check_branch
          %532 = sbr.rel (%p530) target = $region48
        $region47: #{tpu_custom_call.1} parent=11 // pred_region
          %s534 = ssub.s32 16, 16
          %535 = vsyncadd [#allocation18], %s534
          %s537 = sshll.u32 [#allocation19], 4
          %s538 = int_to_ptr.vmem [resolvable:$true] %s537
          %540 = dma.hbm_to_vmem [thread:$0]  %s10, 16, %s538, [#allocation18]
        $region48: #{tpu_custom_call.1} parent=11 // pred_fallthru
          _
      $region12: #{tpu_custom_call.1} parent=5 // pred_fallthru
        _
      %p541 = scmp.lt.s32.totalorder %s40, 2
      // Predicated region
      $region49: #{tpu_custom_call.1} parent=5 // pred_check
        %p542 = pneg %p541
      $region50: #{tpu_custom_call.1} parent=5 // pred_check_branch
        %544 = sbr.rel (%p542) target = $region52
      $region51: #{tpu_custom_call.1} parent=5 // pred_region
        // Predicated region
        $region53: #{tpu_custom_call.1} parent=51 // pred_check
          %p545 = pneg %p74
        $region54: #{tpu_custom_call.1} parent=51 // pred_check_branch
          %547 = sbr.rel (%p545) target = $region56
        $region55: #{tpu_custom_call.1} parent=51 // pred_region
          %s548 = sand.u32 %s64, 1
          %s549 = scalar_lea.sflag [#allocation3], %s548
          %s550 = sand.u32 %s64, 1
          %s551 = smul.addr %s550, 8
          %s552 = scalar_lea.vmem [#allocation2], %s551
          %s554 = ssub.s32 128, 128
          %555 = vsyncadd %s549, %s554
          %s556 = sadd.s32 %s48, %s47
          %s557 = smul.addr %s556, 128
          %s558 = scalar_lea.hbm %s0, %s557
          %s560 = sshll.u32 %s552, 4
          %s561 = int_to_ptr.vmem [resolvable:$true] %s560
          %563 = dma.hbm_to_vmem [thread:$0]  %s558, 128, %s561, %s549
        $region56: #{tpu_custom_call.1} parent=51 // pred_fallthru
          _
        // Predicated region
        $region57: #{tpu_custom_call.1} parent=51 // pred_check
          %p564 = pneg %p102
        $region58: #{tpu_custom_call.1} parent=51 // pred_check_branch
          %566 = sbr.rel (%p564) target = $region60
        $region59: #{tpu_custom_call.1} parent=51 // pred_region
          %s567 = sand.u32 %s40, 1
          %s568 = scalar_lea.sflag [#allocation6], %s567
          %s569 = sand.u32 %s92, 1
          %s570 = smul.addr %s569, 8
          %s571 = scalar_lea.vmem [#allocation5], %s570
          %s573 = ssub.s32 128, 128
          %574 = vsyncadd %s568, %s573
          %s575 = sadd.s32 %s48, %s47
          %s576 = smul.addr %s575, 128
          %s577 = scalar_lea.hbm %s1, %s576
          %s579 = sshll.u32 %s571, 4
          %s580 = int_to_ptr.vmem [resolvable:$true] %s579
          %582 = dma.hbm_to_vmem [thread:$0]  %s577, 128, %s580, %s568
        $region60: #{tpu_custom_call.1} parent=51 // pred_fallthru
          _
      $region52: #{tpu_custom_call.1} parent=5 // pred_fallthru
        _
      %p583 = scmp.le.s32.totalorder 1, %s40
      %p584 = scmp.lt.s32.totalorder %s40, 3
      %p585 = pnand %p583, %p584
      %p586 = pneg %p585
      // Predicated region
      $region61: #{tpu_custom_call.1} parent=5 // pred_check
        _
      $region62: #{tpu_custom_call.1} parent=5 // pred_check_branch
        %588 = sbr.rel (%p585) target = $region64
      $region63: #{tpu_custom_call.1} parent=5 // pred_region
        %s589 = ssub.s32 %s40, 1
        %s590 = sand.u32 %s67, 1
        %s591 = scalar_lea.sflag [#allocation3], %s590
        %s592 = sand.u32 %s67, 1
        %s593 = smul.addr %s592, 8
        %s594 = scalar_lea.vmem [#allocation2], %s593
        // Predicated region
        $region65: #{tpu_custom_call.1} parent=63 // pred_check
          %p595 = pneg %p80
        $region66: #{tpu_custom_call.1} parent=63 // pred_check_branch
          %597 = sbr.rel (%p595) target = $region68
        $region67: #{tpu_custom_call.1} parent=63 // pred_region
          %598 = dma.done %s591, 128
        $region68: #{tpu_custom_call.1} parent=63 // pred_fallthru
          _
        %s599 = sand.u32 %s45, 1
        %s600 = scalar_lea.sflag [#allocation6], %s599
        %s601 = sand.u32 %s95, 1
        %s602 = smul.addr %s601, 8
        %s603 = scalar_lea.vmem [#allocation5], %s602
        // Predicated region
        $region69: #{tpu_custom_call.1} parent=63 // pred_check
          %p604 = pneg %p108
        $region70: #{tpu_custom_call.1} parent=63 // pred_check_branch
          %606 = sbr.rel (%p604) target = $region72
        $region71: #{tpu_custom_call.1} parent=63 // pred_region
          %607 = dma.done %s600, 128
        $region72: #{tpu_custom_call.1} parent=63 // pred_fallthru
          _
        // Predicated region
        $region73: #{tpu_custom_call.1} parent=63 // pred_check
          %p608 = pneg %p134
        $region74: #{tpu_custom_call.1} parent=63 // pred_check_branch
          %610 = sbr.rel (%p608) target = $region76
        $region75: #{tpu_custom_call.1} parent=63 // pred_region
          %611 = dma.done [#allocation6], 128
        $region76: #{tpu_custom_call.1} parent=63 // pred_fallthru
          _
        // Predicated region
        $region77: #{tpu_custom_call.1} parent=63 // pred_check
          %p612 = pneg %p160
        $region78: #{tpu_custom_call.1} parent=63 // pred_check_branch
          %614 = sbr.rel (%p612) target = $region80
        $region79: #{tpu_custom_call.1} parent=63 // pred_region
          %615 = dma.done [#allocation9], 128
        $region80: #{tpu_custom_call.1} parent=63 // pred_fallthru
          _
        // Predicated region
        $region81: #{tpu_custom_call.1} parent=63 // pred_check
          %p616 = pneg %p181
        $region82: #{tpu_custom_call.1} parent=63 // pred_check_branch
          %618 = sbr.rel (%p616) target = $region84
        $region83: #{tpu_custom_call.1} parent=63 // pred_region
          %619 = dma.done [#allocation9], 16
        $region84: #{tpu_custom_call.1} parent=63 // pred_fallthru
          _
        // Predicated region
        $region85: #{tpu_custom_call.1} parent=63 // pred_check
          %p620 = pneg %p202
        $region86: #{tpu_custom_call.1} parent=63 // pred_check_branch
          %622 = sbr.rel (%p620) target = $region88
        $region87: #{tpu_custom_call.1} parent=63 // pred_region
          %623 = dma.done [#allocation12], 16
        $region88: #{tpu_custom_call.1} parent=63 // pred_fallthru
          _
        // Predicated region
        $region89: #{tpu_custom_call.1} parent=63 // pred_check
          %p624 = pneg %p223
        $region90: #{tpu_custom_call.1} parent=63 // pred_check_branch
          %626 = sbr.rel (%p624) target = $region92
        $region91: #{tpu_custom_call.1} parent=63 // pred_region
          %627 = dma.done [#allocation12], 256
        $region92: #{tpu_custom_call.1} parent=63 // pred_fallthru
          _
        // Predicated region
        $region93: #{tpu_custom_call.1} parent=63 // pred_check
          %p628 = pneg %p244
        $region94: #{tpu_custom_call.1} parent=63 // pred_check_branch
          %630 = sbr.rel (%p628) target = $region96
        $region95: #{tpu_custom_call.1} parent=63 // pred_region
          %631 = dma.done [#allocation15], 64
        $region96: #{tpu_custom_call.1} parent=63 // pred_fallthru
          _
        // Predicated region
        $region97: #{tpu_custom_call.1} parent=63 // pred_check
          %p632 = pneg %p265
        $region98: #{tpu_custom_call.1} parent=63 // pred_check_branch
          %634 = sbr.rel (%p632) target = $region100
        $region99: #{tpu_custom_call.1} parent=63 // pred_region
          %635 = dma.done [#allocation15], 16
        $region100: #{tpu_custom_call.1} parent=63 // pred_fallthru
          _
        // Predicated region
        $region101: #{tpu_custom_call.1} parent=63 // pred_check
          %p636 = pneg %p286
        $region102: #{tpu_custom_call.1} parent=63 // pred_check_branch
          %638 = sbr.rel (%p636) target = $region104
        $region103: #{tpu_custom_call.1} parent=63 // pred_region
          %639 = dma.done [#allocation18], 256
        $region104: #{tpu_custom_call.1} parent=63 // pred_fallthru
          _
        // Predicated region
        $region105: #{tpu_custom_call.1} parent=63 // pred_check
          %p640 = pneg %p307
        $region106: #{tpu_custom_call.1} parent=63 // pred_check_branch
          %642 = sbr.rel (%p640) target = $region108
        $region107: #{tpu_custom_call.1} parent=63 // pred_region
          %643 = dma.done [#allocation18], 16
        $region108: #{tpu_custom_call.1} parent=63 // pred_fallthru
          _
        %s644 = sand.u32 %s67, 1
        %s645 = scalar_lea.sflag [#allocation3], %s644
        %s646 = sand.u32 %s67, 1
        %s647 = smul.addr %s646, 8
        %s648 = scalar_lea.vmem [#allocation2], %s647
        %p649 = pneg %p80
        %p650 = pneg %p77
        %s651 = sand.u32 %s45, 1
        %s652 = scalar_lea.sflag [#allocation6], %s651
        %s653 = sand.u32 %s95, 1
        %s654 = smul.addr %s653, 8
        %s655 = scalar_lea.vmem [#allocation5], %s654
        %p656 = pneg %p108
        %p657 = pneg %p105
        %p658 = pneg %p134
        %p659 = pneg %p131
        %p660 = pneg %p160
        %p661 = pneg %p157
        %p662 = pneg %p181
        %p663 = pneg %p178
        %p664 = pneg %p202
        %p665 = pneg %p199
        %p666 = pneg %p223
        %p667 = pneg %p220
        %p668 = pneg %p244
        %p669 = pneg %p241
        %p670 = pneg %p265
        %p671 = pneg %p262
        %p672 = pneg %p286
        %p673 = pneg %p283
        %p674 = pneg %p307
        %p675 = pneg %p304
        %p676 = pneg %p335
        %p677 = pneg %p332
        %s678 = sand.u32 %s322, 1
        %s679 = scalar_lea.sflag [#allocation4], %s678
        %s680 = sand.u32 %s322, 1
        %s681 = smul.addr %s680, 8
        %s682 = scalar_lea.vmem [#allocation20], %s681
        %p683 = pneg %p363
        %p684 = pneg %p360
        %s685 = sand.u32 %s45, 1
        %s686 = scalar_lea.sflag [#allocation22], %s685
        %s687 = sand.u32 %s350, 1
        %s688 = smul.addr %s687, 4
        %s689 = scalar_lea.vmem [#allocation21], %s688
        %p690 = pneg %p391
        %p691 = pneg %p388
        %s692 = sand.u32 %s45, 1
        %s693 = scalar_lea.sflag [#allocation22], %s692
        %s694 = sand.u32 %s378, 1
        %s695 = smul.addr %s694, 4
        %s696 = scalar_lea.vmem [#allocation23], %s695
        %p697 = pneg %p419
        %p698 = pneg %p416
        %s699 = sand.u32 %s406, 1
        %s700 = scalar_lea.sflag [#allocation25], %s699
        %s701 = sand.u32 %s406, 1
        %s702 = smul.addr %s701, 4
        %s703 = scalar_lea.vmem [#allocation24], %s702
        %v705 = vld [vmem:[%s594] sm:$0xff]
        %v706 = vld [vmem:[%s603] sm:$0xff]
        %v707 = vld [vmem:[#allocation10] sm:$0x1]
        %v708 = vld [vmem:[#allocation11] sm:$0x1]
        %vm709 = vcmask 261120
        %v710 = vsel %vm709, %v705, 0.0
        %711 = vadd.xlane.f32.xlu0 %v710
        %v712 = vpop.xlane.xlu0 %711
        %v713 = vrcp.pop 32.0
        %v714 = vmul.f32 %v712, %v713
        %v715 = vsub.f32 %v705, %v714
        %v716 = vmul.f32 %v715, %v715
        %v717 = vsel %vm709, %v716, 0.0
        %718 = vadd.xlane.f32.xlu0 %v717
        %v719 = vpop.xlane.xlu0 %718
        %v720 = vmul.f32 %v719, %v713
        %v721 = vadd.f32 %v720, 1e-05
        %v722 = vrsqrt.pop %v721
        %v723 = vmul.f32 %v715, %v722
        %v725 = vlaneseq
        %v726 = vshrl.u32 %v725, 7
        %v727 = vsub.s32 0, %v726
        %v728 = vrot.slane %v707, %v727
        %v730 = vmul.f32 %v723, %v728
        %v732 = vlaneseq
        %v733 = vshrl.u32 %v732, 7
        %v734 = vsub.s32 0, %v733
        %v735 = vrot.slane %v708, %v734
        %v737 = vadd.f32 %v730, %v735
        %v738 = vpack.c.bf16 %v737, %v737
        %v739 = vld [vmem:[#allocation13] sm:$0xf]
        %v740 = vld [vmem:[#allocation13 + $0x4] sm:$0xf]
        %v741 = vld [vmem:[#allocation13 + $0x8] sm:$0xf]
        %v742 = vld [vmem:[#allocation13 + $0xc] sm:$0xf]
        %v743 = vpack.c.bf16 %v706, %v706
        %v744 = vld [vmem:[#allocation14] sm:$0xf]
        %vm745 = vcmask 64512
        %v747 = vsel %vm745, %v743, 0
        %vm749 = vcmask 1043456
        %v751 = vsel %vm749, %v744, 0
        %753 = vmatprep.subr.bf16.mxu0 0
        %754 = vmatpush1.bf16.msra.mxu0 %v751
        %755 = vmatprep.subr.bf16.mxu0 0
        %756 = vmatpush1.bf16.msra.mxu0 0
        %757 = vmatprep.subr.bf16.mxu0 0
        %758 = vmatpush1.bf16.msra.mxu0 0
        %759 = vmatprep.subr.bf16.mxu0 0
        %760 = vmatpush1.bf16.msra.mxu0 0
        %761 = vmatprep.subr.bf16.mxu0 0
        %762 = vmatpush1.bf16.msra.mxu0 0
        %763 = vmatprep.subr.bf16.mxu0 0
        %764 = vmatpush1.bf16.msra.mxu0 0
        %765 = vmatprep.subr.bf16.mxu0 0
        %766 = vmatpush1.bf16.msra.mxu0 0
        %767 = vmatprep.subr.bf16.mxu0 0
        %768 = vmatpush1.bf16.msra.mxu0 0
        %769 = vmatprep.subr.bf16.mxu0 0
        %770 = vmatpush1.bf16.msra.mxu0 0
        %771 = vmatprep.subr.bf16.mxu0 0
        %772 = vmatpush1.bf16.msra.mxu0 0
        %773 = vmatprep.subr.bf16.mxu0 0
        %774 = vmatpush1.bf16.msra.mxu0 0
        %775 = vmatprep.subr.bf16.mxu0 0
        %776 = vmatpush1.bf16.msra.mxu0 0
        %777 = vmatprep.subr.bf16.mxu0 0
        %778 = vmatpush1.bf16.msra.mxu0 0
        %779 = vmatprep.subr.bf16.mxu0 0
        %780 = vmatpush1.bf16.msra.mxu0 0
        %781 = vmatprep.subr.bf16.mxu0 0
        %782 = vmatpush1.bf16.msra.mxu0 0
        %783 = vmatprep.subr.bf16.mxu0 0
        %784 = vmatpush1.bf16.msra.mxu0 0
        %785 = vmatprep.mubr.bf16.mxu0 0
        %786 = vmatmul.mubr.bf16.gmra.mrb[0].mxu0 %v747
        %v787 = vpop.f32.mrb[0].mxu0
        %v788 = vadd.f32 0.0, %v787
        %v789 = vpop.f32.mrb[0].mxu0
        %v790 = vpop.f32.mrb[0].mxu0
        %v791 = vpop.f32.mrb[0].mxu0
        %792 = vdwg.mxu0
        %v797 = vunpack.c.l.b16 %v739
        %v798 = vunpack.c.l.b16 %v740
        %v799 = vunpack.c.l.b16 %v741
        %v800 = vunpack.c.l.b16 %v742
        %v801 = vpack.c.b16 %v798, %v797
        %v802 = vpack.c.b16 %v800, %v799
        %v806 = vsel %vm709, %v738, 0
        %808 = vmatprep.subr.bf16.mxu0 0
        %809 = vmatpush1.bf16.msra.mxu0 %v801
        %810 = vmatprep.subr.bf16.mxu0 0
        %811 = vmatpush1.bf16.msra.mxu0 %v802
        %812 = vmatprep.subr.bf16.mxu0 0
        %813 = vmatpush1.bf16.msra.mxu0 0
        %814 = vmatprep.subr.bf16.mxu0 0
        %815 = vmatpush1.bf16.msra.mxu0 0
        %816 = vmatprep.subr.bf16.mxu0 0
        %817 = vmatpush1.bf16.msra.mxu0 0
        %818 = vmatprep.subr.bf16.mxu0 0
        %819 = vmatpush1.bf16.msra.mxu0 0
        %820 = vmatprep.subr.bf16.mxu0 0
        %821 = vmatpush1.bf16.msra.mxu0 0
        %822 = vmatprep.subr.bf16.mxu0 0
        %823 = vmatpush1.bf16.msra.mxu0 0
        %824 = vmatprep.subr.bf16.mxu0 0
        %825 = vmatpush1.bf16.msra.mxu0 0
        %826 = vmatprep.subr.bf16.mxu0 0
        %827 = vmatpush1.bf16.msra.mxu0 0
        %828 = vmatprep.subr.bf16.mxu0 0
        %829 = vmatpush1.bf16.msra.mxu0 0
        %830 = vmatprep.subr.bf16.mxu0 0
        %831 = vmatpush1.bf16.msra.mxu0 0
        %832 = vmatprep.subr.bf16.mxu0 0
        %833 = vmatpush1.bf16.msra.mxu0 0
        %834 = vmatprep.subr.bf16.mxu0 0
        %835 = vmatpush1.bf16.msra.mxu0 0
        %836 = vmatprep.subr.bf16.mxu0 0
        %837 = vmatpush1.bf16.msra.mxu0 0
        %838 = vmatprep.subr.bf16.mxu0 0
        %839 = vmatpush1.bf16.msra.mxu0 0
        %840 = vmatprep.mubr.bf16.mxu0 0
        %841 = vmatmul.mubr.bf16.gmra.mrb[0].mxu0 %v806
        %v842 = vpop.f32.mrb[0].mxu0
        %v843 = vadd.f32 %v788, %v842
        %v844 = vpop.f32.mrb[0].mxu0
        %v845 = vpop.f32.mrb[0].mxu0
        %v846 = vpop.f32.mrb[0].mxu0
        %847 = vdwg.mxu0
        %v848 = vld [vmem:[#allocation16] sm:$0x1]
        %v850 = vlaneseq
        %v851 = vshrl.u32 %v850, 7
        %v852 = vsub.s32 0, %v851
        %v853 = vrot.slane %v848, %v852
        %v855 = vadd.f32 %v843, %v853
        %v856 = vpack.c.bf16 %v855, %v855
        %v857 = vld [vmem:[#allocation17] sm:$0xf]
        %v858 = vld [vmem:[#allocation17 + $0x4] sm:$0xf]
        %v859 = vld [vmem:[#allocation17 + $0x8] sm:$0xf]
        %v860 = vld [vmem:[#allocation17 + $0xc] sm:$0xf]
        %v861 = vld [vmem:[#allocation19] sm:$0x1]
        %v863 = vlaneseq
        %v864 = vshrl.u32 %v863, 7
        %v865 = vsub.s32 0, %v864
        %v866 = vrot.slane %v861, %v865
        %v872 = vunpack.c.l.b16 %v857
        %v873 = vunpack.c.l.b16 %v858
        %v874 = vunpack.c.l.b16 %v859
        %v875 = vunpack.c.l.b16 %v860
        %v876 = vpack.c.b16 %v873, %v872
        %v877 = vpack.c.b16 %v875, %v874
        %v881 = vsel %vm709, %v856, 0
        %883 = vmatprep.subr.bf16.mxu0 0
        %884 = vmatpush1.bf16.msra.mxu0 %v876
        %885 = vmatprep.subr.bf16.mxu0 0
        %886 = vmatpush1.bf16.msra.mxu0 %v877
        %887 = vmatprep.subr.bf16.mxu0 0
        %888 = vmatpush1.bf16.msra.mxu0 0
        %889 = vmatprep.subr.bf16.mxu0 0
        %890 = vmatpush1.bf16.msra.mxu0 0
        %891 = vmatprep.subr.bf16.mxu0 0
        %892 = vmatpush1.bf16.msra.mxu0 0
        %893 = vmatprep.subr.bf16.mxu0 0
        %894 = vmatpush1.bf16.msra.mxu0 0
        %895 = vmatprep.subr.bf16.mxu0 0
        %896 = vmatpush1.bf16.msra.mxu0 0
        %897 = vmatprep.subr.bf16.mxu0 0
        %898 = vmatpush1.bf16.msra.mxu0 0
        %899 = vmatprep.subr.bf16.mxu0 0
        %900 = vmatpush1.bf16.msra.mxu0 0
        %901 = vmatprep.subr.bf16.mxu0 0
        %902 = vmatpush1.bf16.msra.mxu0 0
        %903 = vmatprep.subr.bf16.mxu0 0
        %904 = vmatpush1.bf16.msra.mxu0 0
        %905 = vmatprep.subr.bf16.mxu0 0
        %906 = vmatpush1.bf16.msra.mxu0 0
        %907 = vmatprep.subr.bf16.mxu0 0
        %908 = vmatpush1.bf16.msra.mxu0 0
        %909 = vmatprep.subr.bf16.mxu0 0
        %910 = vmatpush1.bf16.msra.mxu0 0
        %911 = vmatprep.subr.bf16.mxu0 0
        %912 = vmatpush1.bf16.msra.mxu0 0
        %913 = vmatprep.subr.bf16.mxu0 0
        %914 = vmatpush1.bf16.msra.mxu0 0
        %915 = vmatprep.mubr.bf16.mxu0 0
        %916 = vmatmul.mubr.bf16.gmra.mrb[0].mxu0 %v881
        %v917 = vpop.f32.mrb[0].mxu0
        %v918 = vadd.f32 %v866, %v917
        %v919 = vpop.f32.mrb[0].mxu0
        %v920 = vpop.f32.mrb[0].mxu0
        %v921 = vpop.f32.mrb[0].mxu0
        %922 = vdwg.mxu0
        %v923 = vld [vmem:[#allocation7] sm:$0xff]
        %v924 = vld [vmem:[#allocation8] sm:$0xff]
        %v925 = vmul.f32 %v918, %v923
        %927 = vrot.lane.b32.xlu0 %v918, 112
        %v928 = vpop.permute.xlu0 %927
        %930 = vrot.lane.b32.xlu0 %v918, 16
        %v931 = vpop.permute.xlu0 %930
        %vm933 = vcmask 130048
        %v934 = vsel %vm933, %v928, %v931
        %v935 = vmul.f32 %v934, %v924
        %v936 = vadd.f32 %v925, %v935
        %938 = vrot.lane.b32.xlu0 %v923, 32
        %v939 = vpop.permute.xlu0 %938
        %v941 = vmul.f32 %v918, %v939
        %942 = vrot.lane.b32.xlu0 %v918, 80
        %v943 = vpop.permute.xlu0 %942
        %v945 = vsel %vm933, %v943, %v928
        %v946 = vmul.f32 %v945, %v924
        %948 = vrot.lane.b32.xlu0 %v946, 32
        %v949 = vpop.permute.xlu0 %948
        %v951 = vadd.f32 %v941, %v949
        %952 = vst.msk [vmem:[%s682] sm:$0xff] %vm709, %v855
        %v953 = vpack.c.bf16 %v936, %v936
        %vm954 = vcmask 257024
        %955 = vst.msk [vmem:[%s689] sm:$0xf] %vm954, %v953
        %v956 = vpack.c.bf16 %v951, %v951
        %v958 = vunpack.c.l.b16 %v956
        %v959 = vpack.c.b16 %v958, %v958
        %960 = vrot.lane.b32.xlu0 %v959, 96
        %v961 = vpop.permute.xlu0 %960
        %963 = vst.msk [vmem:[%s696] sm:$0xf] %vm954, %v961
        %v964 = vpack.c.bf16 %v918, %v918
        %v966 = vunpack.c.l.b16 %v964
        %v967 = vpack.c.b16 %v966, %v966
        %968 = vrot.lane.b32.xlu0 %v967, 64
        %v969 = vpop.permute.xlu0 %968
        %971 = vst.msk [vmem:[%s703] sm:$0xf] %vm954, %v969
        %s972 = sand.u32 %s322, 1
        %s973 = scalar_lea.sflag [#allocation4], %s972
        %s974 = sand.u32 %s322, 1
        %s975 = smul.addr %s974, 8
        %s976 = scalar_lea.vmem [#allocation20], %s975
        %s977 = sand.u32 %s45, 1
        %s978 = scalar_lea.sflag [#allocation22], %s977
        %s979 = sand.u32 %s350, 1
        %s980 = smul.addr %s979, 4
        %s981 = scalar_lea.vmem [#allocation21], %s980
        %s982 = sand.u32 %s45, 1
        %s983 = scalar_lea.sflag [#allocation22], %s982
        %s984 = sand.u32 %s378, 1
        %s985 = smul.addr %s984, 4
        %s986 = scalar_lea.vmem [#allocation23], %s985
        %s987 = sand.u32 %s406, 1
        %s988 = scalar_lea.sflag [#allocation25], %s987
        %s989 = sand.u32 %s406, 1
        %s990 = smul.addr %s989, 4
        %s991 = scalar_lea.vmem [#allocation24], %s990
        // Predicated region
        $region109: #{tpu_custom_call.1} parent=63 // pred_check
          %p992 = pneg %p332
        $region110: #{tpu_custom_call.1} parent=63 // pred_check_branch
          %994 = sbr.rel (%p992) target = $region112
        $region111: #{tpu_custom_call.1} parent=63 // pred_region
          %s996 = ssub.s32 128, 128
          %997 = vsyncadd %s973, %s996
          %s998 = sadd.s32 %s50, %s49
          %s999 = smul.addr %s998, 128
          %s1000 = scalar_lea.hbm %s11, %s999
          %s1002 = sshll.u32 %s976, 4
          %s1003 = int_to_ptr.vmem [resolvable:$true] %s1002
          %1005 = dma.vmem_to_hbm [thread:$0]  %s1003, 128, %s1000, %s973
        $region112: #{tpu_custom_call.1} parent=63 // pred_fallthru
          _
        // Predicated region
        $region113: #{tpu_custom_call.1} parent=63 // pred_check
          %p1006 = pneg %p360
        $region114: #{tpu_custom_call.1} parent=63 // pred_check_branch
          %1008 = sbr.rel (%p1006) target = $region116
        $region115: #{tpu_custom_call.1} parent=63 // pred_region
          %s1010 = ssub.s32 64, 64
          %1011 = vsyncadd %s978, %s1010
          %s1012 = sadd.s32 %s50, %s49
          %s1013 = smul.addr %s1012, 64
          %s1014 = scalar_lea.hbm %s12, %s1013
          %s1016 = sshll.u32 %s981, 4
          %s1017 = int_to_ptr.vmem [resolvable:$true] %s1016
          %1019 = dma.vmem_to_hbm [thread:$0]  %s1017, 64, %s1014, %s978
        $region116: #{tpu_custom_call.1} parent=63 // pred_fallthru
          _
        // Predicated region
        $region117: #{tpu_custom_call.1} parent=63 // pred_check
          %p1020 = pneg %p388
        $region118: #{tpu_custom_call.1} parent=63 // pred_check_branch
          %1022 = sbr.rel (%p1020) target = $region120
        $region119: #{tpu_custom_call.1} parent=63 // pred_region
          %s1024 = ssub.s32 64, 64
          %1025 = vsyncadd %s983, %s1024
          %s1026 = sadd.s32 %s50, %s49
          %s1027 = smul.addr %s1026, 64
          %s1028 = scalar_lea.hbm %s13, %s1027
          %s1030 = sshll.u32 %s986, 4
          %s1031 = int_to_ptr.vmem [resolvable:$true] %s1030
          %1033 = dma.vmem_to_hbm [thread:$0]  %s1031, 64, %s1028, %s983
        $region120: #{tpu_custom_call.1} parent=63 // pred_fallthru
          _
        // Predicated region
        $region121: #{tpu_custom_call.1} parent=63 // pred_check
          %p1034 = pneg %p416
        $region122: #{tpu_custom_call.1} parent=63 // pred_check_branch
          %1036 = sbr.rel (%p1034) target = $region124
        $region123: #{tpu_custom_call.1} parent=63 // pred_region
          %s1038 = ssub.s32 64, 64
          %1039 = vsyncadd %s988, %s1038
          %s1040 = sadd.s32 %s50, %s49
          %s1041 = smul.addr %s1040, 64
          %s1042 = scalar_lea.hbm %s14, %s1041
          %s1044 = sshll.u32 %s991, 4
          %s1045 = int_to_ptr.vmem [resolvable:$true] %s1044
          %1047 = dma.vmem_to_hbm [thread:$0]  %s1045, 64, %s1042, %s988
        $region124: #{tpu_custom_call.1} parent=63 // pred_fallthru
          _
      $region64: #{tpu_custom_call.1} parent=5 // pred_fallthru
        _
      %p1048 = scmp.le.s32.totalorder 2, %s40
      // Predicated region
      $region125: #{tpu_custom_call.1} parent=5 // pred_check
        %p1049 = pneg %p1048
      $region126: #{tpu_custom_call.1} parent=5 // pred_check_branch
        %1051 = sbr.rel (%p1049) target = $region128
      $region127: #{tpu_custom_call.1} parent=5 // pred_region
        %s1052 = ssub.s32 %s40, 2
        // Predicated region
        $region129: #{tpu_custom_call.1} parent=127 // pred_check
          %p1053 = pneg %p338
        $region130: #{tpu_custom_call.1} parent=127 // pred_check_branch
          %1055 = sbr.rel (%p1053) target = $region132
        $region131: #{tpu_custom_call.1} parent=127 // pred_region
          %s1056 = sand.u32 %s323, 1
          %s1057 = scalar_lea.sflag [#allocation4], %s1056
          %s1058 = sand.u32 %s323, 1
          %s1059 = smul.addr %s1058, 8
          %s1060 = scalar_lea.vmem [#allocation20], %s1059
          %1061 = dma.done %s1057, 128
        $region132: #{tpu_custom_call.1} parent=127 // pred_fallthru
          _
        // Predicated region
        $region133: #{tpu_custom_call.1} parent=127 // pred_check
          %p1062 = pneg %p366
        $region134: #{tpu_custom_call.1} parent=127 // pred_check_branch
          %1064 = sbr.rel (%p1062) target = $region136
        $region135: #{tpu_custom_call.1} parent=127 // pred_region
          %s1065 = sand.u32 %s46, 1
          %s1066 = scalar_lea.sflag [#allocation22], %s1065
          %s1067 = sand.u32 %s351, 1
          %s1068 = smul.addr %s1067, 4
          %s1069 = scalar_lea.vmem [#allocation21], %s1068
          %1070 = dma.done %s1066, 64
        $region136: #{tpu_custom_call.1} parent=127 // pred_fallthru
          _
        // Predicated region
        $region137: #{tpu_custom_call.1} parent=127 // pred_check
          %p1071 = pneg %p394
        $region138: #{tpu_custom_call.1} parent=127 // pred_check_branch
          %1073 = sbr.rel (%p1071) target = $region140
        $region139: #{tpu_custom_call.1} parent=127 // pred_region
          %s1074 = sand.u32 %s46, 1
          %s1075 = scalar_lea.sflag [#allocation22], %s1074
          %s1076 = sand.u32 %s379, 1
          %s1077 = smul.addr %s1076, 4
          %s1078 = scalar_lea.vmem [#allocation23], %s1077
          %1079 = dma.done %s1075, 64
        $region140: #{tpu_custom_call.1} parent=127 // pred_fallthru
          _
        // Predicated region
        $region141: #{tpu_custom_call.1} parent=127 // pred_check
          %p1080 = pneg %p422
        $region142: #{tpu_custom_call.1} parent=127 // pred_check_branch
          %1082 = sbr.rel (%p1080) target = $region144
        $region143: #{tpu_custom_call.1} parent=127 // pred_region
          %s1083 = sand.u32 %s407, 1
          %s1084 = scalar_lea.sflag [#allocation25], %s1083
          %s1085 = sand.u32 %s407, 1
          %s1086 = smul.addr %s1085, 4
          %s1087 = scalar_lea.vmem [#allocation24], %s1086
          %1088 = dma.done %s1084, 64
        $region144: #{tpu_custom_call.1} parent=127 // pred_fallthru
          _
      $region128: #{tpu_custom_call.1} parent=5 // pred_fallthru
        _
    $region6: #{tpu_custom_call.1} parent=1 // loop_footer
      %s44 = sadd.s32 1, %s40
    $region7: #{tpu_custom_call.1} parent=1 // loop_footer_branch
      %39 = sbr.rel target = $region3
    $region8: #{tpu_custom_call.1} parent=1 // loop_exit
      _
    %1089 = vsyncpa [#allocation3], 1
    %s1090 = scalar_lea.sflag [#allocation3], 1
    %1091 = vsyncpa %s1090, 1
    %1092 = vsyncpa [#allocation6], 1
    %s1093 = scalar_lea.sflag [#allocation6], 1
    %1094 = vsyncpa %s1093, 1
    %1095 = vsyncpa [#allocation9], 1
    %1096 = vsyncpa [#allocation12], 1
    %1097 = vsyncpa [#allocation15], 1
    %1098 = vsyncpa [#allocation18], 1
    %1099 = vsyncpa [#allocation4], 1
    %s1100 = scalar_lea.sflag [#allocation4], 1
    %1101 = vsyncpa %s1100, 1
    %1102 = vsyncpa [#allocation22], 1
    %s1103 = scalar_lea.sflag [#allocation22], 1
    %1104 = vsyncpa %s1103, 1
    %1105 = vsyncpa [#allocation25], 1
    %s1106 = scalar_lea.sflag [#allocation25], 1
    %1107 = vsyncpa %s1106, 1

</llo_original>
